<compile_context>
chip_gen: v7x
topology: tpu7x:2x2x1
jax: 0.10.0
libtpu: 0.0.40
codegen_flags: <defaults>
</compile_context>

<pallas_src>
import jax
import jax.numpy as jnp
from jax.experimental import pallas as pl
from jax.experimental.pallas import tpu as pltpu


def lstm_kernel(x_ref, h0_ref, c0_ref, wih_ref, whh_ref, b_ref,
                wout_ref, bout_ref,
                out_ref, hn_ref, cn_ref,
                xw_ref):
    """Whole LSTM recurrence + fused final Linear in one kernel invocation.

    x_ref:    (S*B, I)    seq-major flattened input
    h0/c0:    (B, H)      initial state
    wih_ref:  (I, 4H)     W_ih^T, gate columns permuted to [i, f, o, g]
    whh_ref:  (H, 4H)     W_hh^T, same column permutation
    b_ref:    (1, 4H)     b_ih + b_hh, same permutation
    wout_ref: (H, Opad)   W_out^T (lane-padded)
    bout_ref: (1, Opad)
    xw_ref:   (S*B, 4H)   VMEM scratch for the hoisted input projection
    """
    B, H = h0_ref.shape
    S = x_ref.shape[0] // B

    # ---- Hoisted input projection (off the serial chain) -> VMEM scratch ----
    xw_ref[...] = (jnp.dot(x_ref[...], wih_ref[...],
                           preferred_element_type=jnp.float32)
                   + b_ref[...])

    h = h0_ref[...]               # (B, H) fp32 carry, 1 vreg
    c = c0_ref[...]               # (B, H) fp32 carry, 1 vreg

    # ---- Statically unrolled recurrence (S is small & fixed) ----
    for t in range(S):
        row = pl.multiple_of(t * B, 8)            # aligned 8-sublane slab load
        gates = xw_ref[pl.ds(row, B), :] + jnp.dot(
            h, whh_ref[...], preferred_element_type=jnp.float32)   # (B, 4H)
        # Gate order [i, f, o, g] (permuted in wrapper): one fused sigmoid over
        # a contiguous (B, 3H), one tanh over (B, H).
        sig = jax.nn.sigmoid(gates[:, 0:3 * H])
        i_g = sig[:, 0:H]
        f_g = sig[:, H:2 * H]
        o_g = sig[:, 2 * H:3 * H]
        g_g = jnp.tanh(gates[:, 3 * H:4 * H])
        c = f_g * c + i_g * g_g
        h = o_g * jnp.tanh(c)

    hn_ref[...] = h
    cn_ref[...] = c
    # Fused final Linear: out = h_n @ W_out^T + b_out (lane-dense padded store).
    out_ref[...] = (jnp.dot(h, wout_ref[...], preferred_element_type=jnp.float32)
                    + bout_ref[...])


@jax.jit
def nn_lstm_forward(X, hidden, params):
    """Pallas equivalent of nn_LSTM.forward.

    X: (S, B, I) float32; hidden: (h0, c0) each (1, B, H).
    Returns (output, (h_n, c_n)) with output (1, B, O), h_n/c_n (1, B, H).
    """
    h0, c0 = hidden
    S, B, I = X.shape
    H = params["w_hh"].shape[1]
    O = params["w_out"].shape[0]
    O_pad = -(-O // 128) * 128                       # lane-dense output width

    def permute_gates(w):
        # PyTorch gate blocks along axis 0: [i, f, g, o] -> [i, f, o, g]
        return jnp.concatenate([w[:2 * H], w[3 * H:], w[2 * H:3 * H]], axis=0)

    wih_t = permute_gates(params["w_ih"]).T          # (I, 4H)
    whh_t = permute_gates(params["w_hh"]).T          # (H, 4H)
    b = permute_gates(params["b_ih"] + params["b_hh"]).reshape(1, 4 * H)
    wout_t = jnp.zeros((H, O_pad), jnp.float32).at[:, :O].set(params["w_out"].T)
    bout = jnp.zeros((1, O_pad), jnp.float32).at[:, :O].set(params["b_out"])

    X2 = X.reshape(S * B, I)                         # seq-major flatten (free)

    vmem = pl.BlockSpec(memory_space=pltpu.MemorySpace.VMEM)
    out_pad, h_n, c_n = pl.pallas_call(
        lstm_kernel,
        out_shape=(
            jax.ShapeDtypeStruct((B, O_pad), jnp.float32),
            jax.ShapeDtypeStruct((B, H), jnp.float32),
            jax.ShapeDtypeStruct((B, H), jnp.float32),
        ),
        in_specs=[vmem] * 8,
        out_specs=(vmem, vmem, vmem),
        scratch_shapes=[pltpu.VMEM((S * B, 4 * H), jnp.float32)],
        compiler_params=pltpu.CompilerParams(vmem_limit_bytes=32 * 1024 * 1024),
    )(X2, h0[0], c0[0], wih_t, whh_t, b, wout_t, bout)

    out = out_pad[:, :O]
    return out[None], (h_n[None], c_n[None])


def reference_forward(X, hidden, params):
    """Pure-JAX reference matching PyTorch nn.LSTM + Linear semantics."""
    h, c = hidden[0][0], hidden[1][0]
    H = h.shape[-1]
    for t in range(X.shape[0]):
        gates = (X[t] @ params["w_ih"].T + params["b_ih"]
                 + h @ params["w_hh"].T + params["b_hh"])
        i_g = jax.nn.sigmoid(gates[:, 0 * H:1 * H])
        f_g = jax.nn.sigmoid(gates[:, 1 * H:2 * H])
        g_g = jnp.tanh(gates[:, 2 * H:3 * H])
        o_g = jax.nn.sigmoid(gates[:, 3 * H:4 * H])
        c = f_g * c + i_g * g_g
        h = o_g * jnp.tanh(c)
    out = h @ params["w_out"].T + params["b_out"]
    return out[None], (h[None], c[None])


if __name__ == "__main__":
    # Small shapes consistent with the module's forward (seq-first LSTM + Linear).
    S, B = 8, 8                 # seq_len, batch
    I, H, O = 32, 128, 16       # input_size, hidden_size, output_size

    key = jax.random.PRNGKey(0)
    ks = jax.random.split(key, 8)
    k_std = 1.0 / jnp.sqrt(H)   # PyTorch default init range

    params = {
        "w_ih": jax.random.uniform(ks[0], (4 * H, I), jnp.float32, -k_std, k_std),
        "w_hh": jax.random.uniform(ks[1], (4 * H, H), jnp.float32, -k_std, k_std),
        "b_ih": jax.random.uniform(ks[2], (4 * H,), jnp.float32, -k_std, k_std),
        "b_hh": jax.random.uniform(ks[3], (4 * H,), jnp.float32, -k_std, k_std),
        "w_out": jax.random.uniform(ks[4], (O, H), jnp.float32, -k_std, k_std),
        "b_out": jax.random.uniform(ks[5], (O,), jnp.float32, -k_std, k_std),
    }

    X = jax.random.normal(ks[6], (S, B, I), jnp.float32)
    h0 = jnp.zeros((1, B, H), jnp.float32)   # module.initHidden() semantics
    c0 = jnp.zeros((1, B, H), jnp.float32)

    out, (h_n, c_n) = nn_lstm_forward(X, (h0, c0), params)
    jax.block_until_ready(out)

    ref_out, (ref_h, ref_c) = reference_forward(X, (h0, c0), params)
    assert out.shape == (1, B, O) and h_n.shape == (1, B, H) and c_n.shape == (1, B, H)
    assert jnp.allclose(out, ref_out, atol=1e-5, rtol=1e-5)
    assert jnp.allclose(h_n, ref_h, atol=1e-5, rtol=1e-5)
    assert jnp.allclose(c_n, ref_c, atol=1e-5, rtol=1e-5)

    print("KERNEL_OK")
</pallas_src>

<mosaic_0001>
module attributes {stable_mosaic.version = 11 : i64} {
  func.func @lstm_kernel(%arg0: memref<64x32xf32, #tpu.memory_space<vmem>>, %arg1: memref<8x128xf32, #tpu.memory_space<vmem>>, %arg2: memref<8x128xf32, #tpu.memory_space<vmem>>, %arg3: memref<32x512xf32, #tpu.memory_space<vmem>>, %arg4: memref<128x512xf32, #tpu.memory_space<vmem>>, %arg5: memref<1x512xf32, #tpu.memory_space<vmem>>, %arg6: memref<128x128xf32, #tpu.memory_space<vmem>>, %arg7: memref<1x128xf32, #tpu.memory_space<vmem>>, %arg8: memref<8x128xf32, #tpu.memory_space<vmem>>, %arg9: memref<8x128xf32, #tpu.memory_space<vmem>>, %arg10: memref<8x128xf32, #tpu.memory_space<vmem>>, %arg11: memref<64x512xf32, #tpu.memory_space<vmem>>) attributes {dimension_semantics = [], scalar_prefetch = 0 : i64, scratch_operands = 1 : i64, tpu.core_type = #tpu.core_type<tc>} {
    %c0 = arith.constant 0 : index
    %c0_0 = arith.constant 0 : index
    %0 = vector.load %arg0[%c0, %c0_0] : memref<64x32xf32, #tpu.memory_space<vmem>>, vector<64x32xf32>
    %c0_1 = arith.constant 0 : index
    %c0_2 = arith.constant 0 : index
    %1 = vector.load %arg3[%c0_1, %c0_2] : memref<32x512xf32, #tpu.memory_space<vmem>>, vector<32x512xf32>
    %cst = arith.constant dense<0.000000e+00> : vector<64x512xf32>
    %2 = tpu.matmul %0, %1, %cst {dimension_numbers = #tpu.dot_dimension_numbers<[1], [0], [0], [1], [0, 0, 1, 1], [], []>} : vector<64x32xf32>, vector<32x512xf32>, vector<64x512xf32> -> vector<64x512xf32>
    %c0_3 = arith.constant 0 : index
    %c0_4 = arith.constant 0 : index
    %3 = vector.load %arg5[%c0_3, %c0_4] : memref<1x512xf32, #tpu.memory_space<vmem>>, vector<1x512xf32>
    %4 = vector.broadcast %3 : vector<1x512xf32> to vector<64x512xf32>
    %5 = arith.addf %2, %4 : vector<64x512xf32>
    %c0_5 = arith.constant 0 : index
    %c0_6 = arith.constant 0 : index
    %6 = vector.load %arg11[%c0_5, %c0_6] : memref<64x512xf32, #tpu.memory_space<vmem>>, vector<64x512xf32>
    tpu.vector_store %arg11[%c0_5, %c0_6], %5 {strides = array<i32>} : memref<64x512xf32, #tpu.memory_space<vmem>>, vector<64x512xf32>,
    %c0_7 = arith.constant 0 : index
    %c0_8 = arith.constant 0 : index
    %7 = vector.load %arg1[%c0_7, %c0_8] : memref<8x128xf32, #tpu.memory_space<vmem>>, vector<8x128xf32>
    %c0_9 = arith.constant 0 : index
    %c0_10 = arith.constant 0 : index
    %8 = vector.load %arg2[%c0_9, %c0_10] : memref<8x128xf32, #tpu.memory_space<vmem>>, vector<8x128xf32>
    %c0_i32 = arith.constant 0 : i32
    %9 = tpu.assume_multiple %c0_i32, 8 : i32
    %10 = arith.index_cast %9 : i32 to index
    %c0_11 = arith.constant 0 : index
    %11 = vector.load %arg11[%10, %c0_11] : memref<64x512xf32, #tpu.memory_space<vmem>>, vector<8x512xf32>
    %c0_12 = arith.constant 0 : index
    %c0_13 = arith.constant 0 : index
    %12 = vector.load %arg4[%c0_12, %c0_13] : memref<128x512xf32, #tpu.memory_space<vmem>>, vector<128x512xf32>
    %cst_14 = arith.constant dense<0.000000e+00> : vector<8x512xf32>
    %13 = tpu.matmul %7, %12, %cst_14 {dimension_numbers = #tpu.dot_dimension_numbers<[1], [0], [0], [1], [0, 0, 1, 1], [], []>} : vector<8x128xf32>, vector<128x512xf32>, vector<8x512xf32> -> vector<8x512xf32>
    %14 = arith.addf %11, %13 : vector<8x512xf32>
    %15 = vector.extract_strided_slice %14 {offsets = [0, 0], sizes = [8, 384], strides = [1, 1]} : vector<8x512xf32> to vector<8x384xf32>
    %16 = arith.negf %15 : vector<8x384xf32>
    %17 = math.exp %16 : vector<8x384xf32>
    %cst_15 = arith.constant 1.000000e+00 : f32
    %18 = vector.broadcast %cst_15 : f32 to vector<8x384xf32>
    %19 = arith.addf %18, %17 : vector<8x384xf32>
    %20 = arith.divf %18, %19 : vector<8x384xf32>
    %21 = vector.extract_strided_slice %20 {offsets = [0, 0], sizes = [8, 128], strides = [1, 1]} : vector<8x384xf32> to vector<8x128xf32>
    %22 = vector.extract_strided_slice %20 {offsets = [0, 128], sizes = [8, 128], strides = [1, 1]} : vector<8x384xf32> to vector<8x128xf32>
    %23 = vector.extract_strided_slice %20 {offsets = [0, 256], sizes = [8, 128], strides = [1, 1]} : vector<8x384xf32> to vector<8x128xf32>
    %24 = vector.extract_strided_slice %14 {offsets = [0, 384], sizes = [8, 128], strides = [1, 1]} : vector<8x512xf32> to vector<8x128xf32>
    %25 = math.tanh %24 : vector<8x128xf32>
    %26 = arith.mulf %22, %8 : vector<8x128xf32>
    %27 = arith.mulf %21, %25 : vector<8x128xf32>
    %28 = arith.addf %26, %27 : vector<8x128xf32>
    %29 = math.tanh %28 : vector<8x128xf32>
    %30 = arith.mulf %23, %29 : vector<8x128xf32>
    %c8_i32 = arith.constant 8 : i32
    %31 = tpu.assume_multiple %c8_i32, 8 : i32
    %32 = arith.index_cast %31 : i32 to index
    %c0_16 = arith.constant 0 : index
    %33 = vector.load %arg11[%32, %c0_16] : memref<64x512xf32, #tpu.memory_space<vmem>>, vector<8x512xf32>
    %c0_17 = arith.constant 0 : index
    %c0_18 = arith.constant 0 : index
    %34 = vector.load %arg4[%c0_17, %c0_18] : memref<128x512xf32, #tpu.memory_space<vmem>>, vector<128x512xf32>
    %cst_19 = arith.constant dense<0.000000e+00> : vector<8x512xf32>
    %35 = tpu.matmul %30, %34, %cst_19 {dimension_numbers = #tpu.dot_dimension_numbers<[1], [0], [0], [1], [0, 0, 1, 1], [], []>} : vector<8x128xf32>, vector<128x512xf32>, vector<8x512xf32> -> vector<8x512xf32>
    %36 = arith.addf %33, %35 : vector<8x512xf32>
    %37 = vector.extract_strided_slice %36 {offsets = [0, 0], sizes = [8, 384], strides = [1, 1]} : vector<8x512xf32> to vector<8x384xf32>
    %38 = arith.negf %37 : vector<8x384xf32>
    %39 = math.exp %38 : vector<8x384xf32>
    %cst_20 = arith.constant 1.000000e+00 : f32
    %40 = vector.broadcast %cst_20 : f32 to vector<8x384xf32>
    %41 = arith.addf %40, %39 : vector<8x384xf32>
    %42 = arith.divf %40, %41 : vector<8x384xf32>
    %43 = vector.extract_strided_slice %42 {offsets = [0, 0], sizes = [8, 128], strides = [1, 1]} : vector<8x384xf32> to vector<8x128xf32>
    %44 = vector.extract_strided_slice %42 {offsets = [0, 128], sizes = [8, 128], strides = [1, 1]} : vector<8x384xf32> to vector<8x128xf32>
    %45 = vector.extract_strided_slice %42 {offsets = [0, 256], sizes = [8, 128], strides = [1, 1]} : vector<8x384xf32> to vector<8x128xf32>
    %46 = vector.extract_strided_slice %36 {offsets = [0, 384], sizes = [8, 128], strides = [1, 1]} : vector<8x512xf32> to vector<8x128xf32>
    %47 = math.tanh %46 : vector<8x128xf32>
    %48 = arith.mulf %44, %28 : vector<8x128xf32>
    %49 = arith.mulf %43, %47 : vector<8x128xf32>
    %50 = arith.addf %48, %49 : vector<8x128xf32>
    %51 = math.tanh %50 : vector<8x128xf32>
    %52 = arith.mulf %45, %51 : vector<8x128xf32>
    %c16_i32 = arith.constant 16 : i32
    %53 = tpu.assume_multiple %c16_i32, 8 : i32
    %54 = arith.index_cast %53 : i32 to index
    %c0_21 = arith.constant 0 : index
    %55 = vector.load %arg11[%54, %c0_21] : memref<64x512xf32, #tpu.memory_space<vmem>>, vector<8x512xf32>
    %c0_22 = arith.constant 0 : index
    %c0_23 = arith.constant 0 : index
    %56 = vector.load %arg4[%c0_22, %c0_23] : memref<128x512xf32, #tpu.memory_space<vmem>>, vector<128x512xf32>
    %cst_24 = arith.constant dense<0.000000e+00> : vector<8x512xf32>
    %57 = tpu.matmul %52, %56, %cst_24 {dimension_numbers = #tpu.dot_dimension_numbers<[1], [0], [0], [1], [0, 0, 1, 1], [], []>} : vector<8x128xf32>, vector<128x512xf32>, vector<8x512xf32> -> vector<8x512xf32>
    %58 = arith.addf %55, %57 : vector<8x512xf32>
    %59 = vector.extract_strided_slice %58 {offsets = [0, 0], sizes = [8, 384], strides = [1, 1]} : vector<8x512xf32> to vector<8x384xf32>
    %60 = arith.negf %59 : vector<8x384xf32>
    %61 = math.exp %60 : vector<8x384xf32>
    %cst_25 = arith.constant 1.000000e+00 : f32
    %62 = vector.broadcast %cst_25 : f32 to vector<8x384xf32>
    %63 = arith.addf %62, %61 : vector<8x384xf32>
    %64 = arith.divf %62, %63 : vector<8x384xf32>
    %65 = vector.extract_strided_slice %64 {offsets = [0, 0], sizes = [8, 128], strides = [1, 1]} : vector<8x384xf32> to vector<8x128xf32>
    %66 = vector.extract_strided_slice %64 {offsets = [0, 128], sizes = [8, 128], strides = [1, 1]} : vector<8x384xf32> to vector<8x128xf32>
    %67 = vector.extract_strided_slice %64 {offsets = [0, 256], sizes = [8, 128], strides = [1, 1]} : vector<8x384xf32> to vector<8x128xf32>
    %68 = vector.extract_strided_slice %58 {offsets = [0, 384], sizes = [8, 128], strides = [1, 1]} : vector<8x512xf32> to vector<8x128xf32>
    %69 = math.tanh %68 : vector<8x128xf32>
    %70 = arith.mulf %66, %50 : vector<8x128xf32>
    %71 = arith.mulf %65, %69 : vector<8x128xf32>
    %72 = arith.addf %70, %71 : vector<8x128xf32>
    %73 = math.tanh %72 : vector<8x128xf32>
    %74 = arith.mulf %67, %73 : vector<8x128xf32>
    %c24_i32 = arith.constant 24 : i32
    %75 = tpu.assume_multiple %c24_i32, 8 : i32
    %76 = arith.index_cast %75 : i32 to index
    %c0_26 = arith.constant 0 : index
    %77 = vector.load %arg11[%76, %c0_26] : memref<64x512xf32, #tpu.memory_space<vmem>>, vector<8x512xf32>
    %c0_27 = arith.constant 0 : index
    %c0_28 = arith.constant 0 : index
    %78 = vector.load %arg4[%c0_27, %c0_28] : memref<128x512xf32, #tpu.memory_space<vmem>>, vector<128x512xf32>
    %cst_29 = arith.constant dense<0.000000e+00> : vector<8x512xf32>
    %79 = tpu.matmul %74, %78, %cst_29 {dimension_numbers = #tpu.dot_dimension_numbers<[1], [0], [0], [1], [0, 0, 1, 1], [], []>} : vector<8x128xf32>, vector<128x512xf32>, vector<8x512xf32> -> vector<8x512xf32>
    %80 = arith.addf %77, %79 : vector<8x512xf32>
    %81 = vector.extract_strided_slice %80 {offsets = [0, 0], sizes = [8, 384], strides = [1, 1]} : vector<8x512xf32> to vector<8x384xf32>
    %82 = arith.negf %81 : vector<8x384xf32>
    %83 = math.exp %82 : vector<8x384xf32>
    %cst_30 = arith.constant 1.000000e+00 : f32
    %84 = vector.broadcast %cst_30 : f32 to vector<8x384xf32>
    %85 = arith.addf %84, %83 : vector<8x384xf32>
    %86 = arith.divf %84, %85 : vector<8x384xf32>
    %87 = vector.extract_strided_slice %86 {offsets = [0, 0], sizes = [8, 128], strides = [1, 1]} : vector<8x384xf32> to vector<8x128xf32>
    %88 = vector.extract_strided_slice %86 {offsets = [0, 128], sizes = [8, 128], strides = [1, 1]} : vector<8x384xf32> to vector<8x128xf32>
    %89 = vector.extract_strided_slice %86 {offsets = [0, 256], sizes = [8, 128], strides = [1, 1]} : vector<8x384xf32> to vector<8x128xf32>
    %90 = vector.extract_strided_slice %80 {offsets = [0, 384], sizes = [8, 128], strides = [1, 1]} : vector<8x512xf32> to vector<8x128xf32>
    %91 = math.tanh %90 : vector<8x128xf32>
    %92 = arith.mulf %88, %72 : vector<8x128xf32>
    %93 = arith.mulf %87, %91 : vector<8x128xf32>
    %94 = arith.addf %92, %93 : vector<8x128xf32>
    %95 = math.tanh %94 : vector<8x128xf32>
    %96 = arith.mulf %89, %95 : vector<8x128xf32>
    %c32_i32 = arith.constant 32 : i32
    %97 = tpu.assume_multiple %c32_i32, 8 : i32
    %98 = arith.index_cast %97 : i32 to index
    %c0_31 = arith.constant 0 : index
    %99 = vector.load %arg11[%98, %c0_31] : memref<64x512xf32, #tpu.memory_space<vmem>>, vector<8x512xf32>
    %c0_32 = arith.constant 0 : index
    %c0_33 = arith.constant 0 : index
    %100 = vector.load %arg4[%c0_32, %c0_33] : memref<128x512xf32, #tpu.memory_space<vmem>>, vector<128x512xf32>
    %cst_34 = arith.constant dense<0.000000e+00> : vector<8x512xf32>
    %101 = tpu.matmul %96, %100, %cst_34 {dimension_numbers = #tpu.dot_dimension_numbers<[1], [0], [0], [1], [0, 0, 1, 1], [], []>} : vector<8x128xf32>, vector<128x512xf32>, vector<8x512xf32> -> vector<8x512xf32>
    %102 = arith.addf %99, %101 : vector<8x512xf32>
    %103 = vector.extract_strided_slice %102 {offsets = [0, 0], sizes = [8, 384], strides = [1, 1]} : vector<8x512xf32> to vector<8x384xf32>
    %104 = arith.negf %103 : vector<8x384xf32>
    %105 = math.exp %104 : vector<8x384xf32>
    %cst_35 = arith.constant 1.000000e+00 : f32
    %106 = vector.broadcast %cst_35 : f32 to vector<8x384xf32>
    %107 = arith.addf %106, %105 : vector<8x384xf32>
    %108 = arith.divf %106, %107 : vector<8x384xf32>
    %109 = vector.extract_strided_slice %108 {offsets = [0, 0], sizes = [8, 128], strides = [1, 1]} : vector<8x384xf32> to vector<8x128xf32>
    %110 = vector.extract_strided_slice %108 {offsets = [0, 128], sizes = [8, 128], strides = [1, 1]} : vector<8x384xf32> to vector<8x128xf32>
    %111 = vector.extract_strided_slice %108 {offsets = [0, 256], sizes = [8, 128], strides = [1, 1]} : vector<8x384xf32> to vector<8x128xf32>
    %112 = vector.extract_strided_slice %102 {offsets = [0, 384], sizes = [8, 128], strides = [1, 1]} : vector<8x512xf32> to vector<8x128xf32>
    %113 = math.tanh %112 : vector<8x128xf32>
    %114 = arith.mulf %110, %94 : vector<8x128xf32>
    %115 = arith.mulf %109, %113 : vector<8x128xf32>
    %116 = arith.addf %114, %115 : vector<8x128xf32>
    %117 = math.tanh %116 : vector<8x128xf32>
    %118 = arith.mulf %111, %117 : vector<8x128xf32>
    %c40_i32 = arith.constant 40 : i32
    %119 = tpu.assume_multiple %c40_i32, 8 : i32
    %120 = arith.index_cast %119 : i32 to index
    %c0_36 = arith.constant 0 : index
    %121 = vector.load %arg11[%120, %c0_36] : memref<64x512xf32, #tpu.memory_space<vmem>>, vector<8x512xf32>
    %c0_37 = arith.constant 0 : index
    %c0_38 = arith.constant 0 : index
    %122 = vector.load %arg4[%c0_37, %c0_38] : memref<128x512xf32, #tpu.memory_space<vmem>>, vector<128x512xf32>
    %cst_39 = arith.constant dense<0.000000e+00> : vector<8x512xf32>
    %123 = tpu.matmul %118, %122, %cst_39 {dimension_numbers = #tpu.dot_dimension_numbers<[1], [0], [0], [1], [0, 0, 1, 1], [], []>} : vector<8x128xf32>, vector<128x512xf32>, vector<8x512xf32> -> vector<8x512xf32>
    %124 = arith.addf %121, %123 : vector<8x512xf32>
    %125 = vector.extract_strided_slice %124 {offsets = [0, 0], sizes = [8, 384], strides = [1, 1]} : vector<8x512xf32> to vector<8x384xf32>
    %126 = arith.negf %125 : vector<8x384xf32>
    %127 = math.exp %126 : vector<8x384xf32>
    %cst_40 = arith.constant 1.000000e+00 : f32
    %128 = vector.broadcast %cst_40 : f32 to vector<8x384xf32>
    %129 = arith.addf %128, %127 : vector<8x384xf32>
    %130 = arith.divf %128, %129 : vector<8x384xf32>
    %131 = vector.extract_strided_slice %130 {offsets = [0, 0], sizes = [8, 128], strides = [1, 1]} : vector<8x384xf32> to vector<8x128xf32>
    %132 = vector.extract_strided_slice %130 {offsets = [0, 128], sizes = [8, 128], strides = [1, 1]} : vector<8x384xf32> to vector<8x128xf32>
    %133 = vector.extract_strided_slice %130 {offsets = [0, 256], sizes = [8, 128], strides = [1, 1]} : vector<8x384xf32> to vector<8x128xf32>
    %134 = vector.extract_strided_slice %124 {offsets = [0, 384], sizes = [8, 128], strides = [1, 1]} : vector<8x512xf32> to vector<8x128xf32>
    %135 = math.tanh %134 : vector<8x128xf32>
    %136 = arith.mulf %132, %116 : vector<8x128xf32>
    %137 = arith.mulf %131, %135 : vector<8x128xf32>
    %138 = arith.addf %136, %137 : vector<8x128xf32>
    %139 = math.tanh %138 : vector<8x128xf32>
    %140 = arith.mulf %133, %139 : vector<8x128xf32>
    %c48_i32 = arith.constant 48 : i32
    %141 = tpu.assume_multiple %c48_i32, 8 : i32
    %142 = arith.index_cast %141 : i32 to index
    %c0_41 = arith.constant 0 : index
    %143 = vector.load %arg11[%142, %c0_41] : memref<64x512xf32, #tpu.memory_space<vmem>>, vector<8x512xf32>
    %c0_42 = arith.constant 0 : index
    %c0_43 = arith.constant 0 : index
    %144 = vector.load %arg4[%c0_42, %c0_43] : memref<128x512xf32, #tpu.memory_space<vmem>>, vector<128x512xf32>
    %cst_44 = arith.constant dense<0.000000e+00> : vector<8x512xf32>
    %145 = tpu.matmul %140, %144, %cst_44 {dimension_numbers = #tpu.dot_dimension_numbers<[1], [0], [0], [1], [0, 0, 1, 1], [], []>} : vector<8x128xf32>, vector<128x512xf32>, vector<8x512xf32> -> vector<8x512xf32>
    %146 = arith.addf %143, %145 : vector<8x512xf32>
    %147 = vector.extract_strided_slice %146 {offsets = [0, 0], sizes = [8, 384], strides = [1, 1]} : vector<8x512xf32> to vector<8x384xf32>
    %148 = arith.negf %147 : vector<8x384xf32>
    %149 = math.exp %148 : vector<8x384xf32>
    %cst_45 = arith.constant 1.000000e+00 : f32
    %150 = vector.broadcast %cst_45 : f32 to vector<8x384xf32>
    %151 = arith.addf %150, %149 : vector<8x384xf32>
    %152 = arith.divf %150, %151 : vector<8x384xf32>
    %153 = vector.extract_strided_slice %152 {offsets = [0, 0], sizes = [8, 128], strides = [1, 1]} : vector<8x384xf32> to vector<8x128xf32>
    %154 = vector.extract_strided_slice %152 {offsets = [0, 128], sizes = [8, 128], strides = [1, 1]} : vector<8x384xf32> to vector<8x128xf32>
    %155 = vector.extract_strided_slice %152 {offsets = [0, 256], sizes = [8, 128], strides = [1, 1]} : vector<8x384xf32> to vector<8x128xf32>
    %156 = vector.extract_strided_slice %146 {offsets = [0, 384], sizes = [8, 128], strides = [1, 1]} : vector<8x512xf32> to vector<8x128xf32>
    %157 = math.tanh %156 : vector<8x128xf32>
    %158 = arith.mulf %154, %138 : vector<8x128xf32>
    %159 = arith.mulf %153, %157 : vector<8x128xf32>
    %160 = arith.addf %158, %159 : vector<8x128xf32>
    %161 = math.tanh %160 : vector<8x128xf32>
    %162 = arith.mulf %155, %161 : vector<8x128xf32>
    %c56_i32 = arith.constant 56 : i32
    %163 = tpu.assume_multiple %c56_i32, 8 : i32
    %164 = arith.index_cast %163 : i32 to index
    %c0_46 = arith.constant 0 : index
    %165 = vector.load %arg11[%164, %c0_46] : memref<64x512xf32, #tpu.memory_space<vmem>>, vector<8x512xf32>
    %c0_47 = arith.constant 0 : index
    %c0_48 = arith.constant 0 : index
    %166 = vector.load %arg4[%c0_47, %c0_48] : memref<128x512xf32, #tpu.memory_space<vmem>>, vector<128x512xf32>
    %cst_49 = arith.constant dense<0.000000e+00> : vector<8x512xf32>
    %167 = tpu.matmul %162, %166, %cst_49 {dimension_numbers = #tpu.dot_dimension_numbers<[1], [0], [0], [1], [0, 0, 1, 1], [], []>} : vector<8x128xf32>, vector<128x512xf32>, vector<8x512xf32> -> vector<8x512xf32>
    %168 = arith.addf %165, %167 : vector<8x512xf32>
    %169 = vector.extract_strided_slice %168 {offsets = [0, 0], sizes = [8, 384], strides = [1, 1]} : vector<8x512xf32> to vector<8x384xf32>
    %170 = arith.negf %169 : vector<8x384xf32>
    %171 = math.exp %170 : vector<8x384xf32>
    %cst_50 = arith.constant 1.000000e+00 : f32
    %172 = vector.broadcast %cst_50 : f32 to vector<8x384xf32>
    %173 = arith.addf %172, %171 : vector<8x384xf32>
    %174 = arith.divf %172, %173 : vector<8x384xf32>
    %175 = vector.extract_strided_slice %174 {offsets = [0, 0], sizes = [8, 128], strides = [1, 1]} : vector<8x384xf32> to vector<8x128xf32>
    %176 = vector.extract_strided_slice %174 {offsets = [0, 128], sizes = [8, 128], strides = [1, 1]} : vector<8x384xf32> to vector<8x128xf32>
    %177 = vector.extract_strided_slice %174 {offsets = [0, 256], sizes = [8, 128], strides = [1, 1]} : vector<8x384xf32> to vector<8x128xf32>
    %178 = vector.extract_strided_slice %168 {offsets = [0, 384], sizes = [8, 128], strides = [1, 1]} : vector<8x512xf32> to vector<8x128xf32>
    %179 = math.tanh %178 : vector<8x128xf32>
    %180 = arith.mulf %176, %160 : vector<8x128xf32>
    %181 = arith.mulf %175, %179 : vector<8x128xf32>
    %182 = arith.addf %180, %181 : vector<8x128xf32>
    %183 = math.tanh %182 : vector<8x128xf32>
    %184 = arith.mulf %177, %183 : vector<8x128xf32>
    %c0_51 = arith.constant 0 : index
    %c0_52 = arith.constant 0 : index
    %185 = vector.load %arg9[%c0_51, %c0_52] : memref<8x128xf32, #tpu.memory_space<vmem>>, vector<8x128xf32>
    tpu.vector_store %arg9[%c0_51, %c0_52], %184 {strides = array<i32>} : memref<8x128xf32, #tpu.memory_space<vmem>>, vector<8x128xf32>,
    %c0_53 = arith.constant 0 : index
    %c0_54 = arith.constant 0 : index
    %186 = vector.load %arg10[%c0_53, %c0_54] : memref<8x128xf32, #tpu.memory_space<vmem>>, vector<8x128xf32>
    tpu.vector_store %arg10[%c0_53, %c0_54], %182 {strides = array<i32>} : memref<8x128xf32, #tpu.memory_space<vmem>>, vector<8x128xf32>,
    %c0_55 = arith.constant 0 : index
    %c0_56 = arith.constant 0 : index
    %187 = vector.load %arg6[%c0_55, %c0_56] : memref<128x128xf32, #tpu.memory_space<vmem>>, vector<128x128xf32>
    %cst_57 = arith.constant dense<0.000000e+00> : vector<8x128xf32>
    %188 = tpu.matmul %184, %187, %cst_57 {dimension_numbers = #tpu.dot_dimension_numbers<[1], [0], [0], [1], [0, 0, 1, 1], [], []>} : vector<8x128xf32>, vector<128x128xf32>, vector<8x128xf32> -> vector<8x128xf32>
    %c0_58 = arith.constant 0 : index
    %c0_59 = arith.constant 0 : index
    %189 = vector.load %arg7[%c0_58, %c0_59] : memref<1x128xf32, #tpu.memory_space<vmem>>, vector<1x128xf32>
    %190 = vector.broadcast %189 : vector<1x128xf32> to vector<8x128xf32>
    %191 = arith.addf %188, %190 : vector<8x128xf32>
    %c0_60 = arith.constant 0 : index
    %c0_61 = arith.constant 0 : index
    %192 = vector.load %arg8[%c0_60, %c0_61] : memref<8x128xf32, #tpu.memory_space<vmem>>, vector<8x128xf32>
    tpu.vector_store %arg8[%c0_60, %c0_61], %191 {strides = array<i32>} : memref<8x128xf32, #tpu.memory_space<vmem>>, vector<8x128xf32>,
    return
  }
}

</mosaic_0001>

<llo_original>
// kernel: nn_lstm_forward.1
$region0: #{nn_lstm_forward.1}
  #allocation0 [shape = 'u32[]', space=smem, size = 0x4, offset = 0x4, fixed_abs, tag = 'smem constant byte address 0x4 - core index']
  #allocation1 [shape = 'u32[144,128]{1,0:T(1,128)}', space=vmem, size = 0x12000, scoped, tag = 'internal scratch']
  #allocation2 [shape = 'f32[64,512]{1,0:T(8,128)}', space=vmem, size = 0x20000, scoped, tag = 'scratch operand']
  %s0 = inlined_call_operand.vmem [shape: f32[64,32], index: 0, kind: input, shape index: {}]
  %s1 = inlined_call_operand.vmem [shape: f32[8,128], index: 1, kind: input, shape index: {}]
  %s2 = inlined_call_operand.vmem [shape: f32[8,128], index: 2, kind: input, shape index: {}]
  %s3 = inlined_call_operand.vmem [shape: f32[32,512], index: 3, kind: input, shape index: {}]
  %s4 = inlined_call_operand.vmem [shape: f32[128,512], index: 4, kind: input, shape index: {}]
  %s5 = inlined_call_operand.vmem [shape: f32[1,512], index: 5, kind: input, shape index: {}]
  %s6 = inlined_call_operand.vmem [shape: f32[128,128], index: 6, kind: input, shape index: {}]
  %s7 = inlined_call_operand.vmem [shape: f32[1,128], index: 7, kind: input, shape index: {}]
  %s8 = inlined_call_operand.vmem [shape: f32[8,128], index: 8, kind: output, shape index: {0}]
  %s9 = inlined_call_operand.hbm [shape: f32[8,128], index: 9, kind: output, shape index: {1}]
  %s10 = inlined_call_operand.hbm [shape: f32[8,128], index: 10, kind: output, shape index: {2}]
  %11 = xla_tuple %s8, %s9, %s10
  %s12 = sld [smem:[#allocation0]]
  $region58: #{nn_lstm_forward.1} parent=0
    _
  %s14 = ssub.s32 1, %s12
  %s15 = scalar_select 0, %s14, %s12
  $region1: #{nn_lstm_forward.1} parent=0
    #allocation3 [shape = 'u8[4096]{0}', space=vmem, size = 0x1000, scoped, tag = 'output window, operand 1, single buffered']
    #allocation4 [shape = 's32[1]{0}', space=sflag, size = 0x4, scoped, tag = 'scoped memory for nn_lstm_forward.1']
    #allocation5 [shape = 'u8[4096]{0}', space=vmem, size = 0x1000, scoped, tag = 'output window, operand 2, single buffered']
    #allocation6 [shape = 's32[1]{0}', space=sflag, size = 0x4, scoped, tag = 'scoped memory for nn_lstm_forward.1']
    %16 = vsyncpa [#allocation4], 0
    %17 = vsyncpa [#allocation6], 0
    // Predicated region
    $region2: #{nn_lstm_forward.1} parent=1 // pred_check
      _
    $region3: #{nn_lstm_forward.1} parent=1 // pred_check_branch
      %19 = sbr.rel (0) target = $region5
    $region4: #{nn_lstm_forward.1} parent=1 // pred_region
      _
    $region5: #{nn_lstm_forward.1} parent=1 // pred_fallthru
      _
    // Predicated region
    $region6: #{nn_lstm_forward.1} parent=1 // pred_check
      _
    $region7: #{nn_lstm_forward.1} parent=1 // pred_check_branch
      %21 = sbr.rel (0) target = $region9
    $region8: #{nn_lstm_forward.1} parent=1 // pred_region
      _
    $region9: #{nn_lstm_forward.1} parent=1 // pred_fallthru
      _
    // Predicated region
    $region10: #{nn_lstm_forward.1} parent=1 // pred_check
      _
    $region11: #{nn_lstm_forward.1} parent=1 // pred_check_branch
      %23 = sbr.rel (0) target = $region13
    $region12: #{nn_lstm_forward.1} parent=1 // pred_region
      _
    $region13: #{nn_lstm_forward.1} parent=1 // pred_fallthru
      _
    // Predicated region
    $region14: #{nn_lstm_forward.1} parent=1 // pred_check
      _
    $region15: #{nn_lstm_forward.1} parent=1 // pred_check_branch
      %25 = sbr.rel (0) target = $region17
    $region16: #{nn_lstm_forward.1} parent=1 // pred_region
      _
    $region17: #{nn_lstm_forward.1} parent=1 // pred_fallthru
      _
    // Predicated region
    $region18: #{nn_lstm_forward.1} parent=1 // pred_check
      _
    $region19: #{nn_lstm_forward.1} parent=1 // pred_check_branch
      %27 = sbr.rel (0) target = $region21
    $region20: #{nn_lstm_forward.1} parent=1 // pred_region
      _
    $region21: #{nn_lstm_forward.1} parent=1 // pred_fallthru
      _
    // Predicated region
    $region22: #{nn_lstm_forward.1} parent=1 // pred_check
      _
    $region23: #{nn_lstm_forward.1} parent=1 // pred_check_branch
      %29 = sbr.rel (0) target = $region25
    $region24: #{nn_lstm_forward.1} parent=1 // pred_region
      _
    $region25: #{nn_lstm_forward.1} parent=1 // pred_fallthru
      _
    // Predicated region
    $region26: #{nn_lstm_forward.1} parent=1 // pred_check
      _
    $region27: #{nn_lstm_forward.1} parent=1 // pred_check_branch
      %31 = sbr.rel (0) target = $region29
    $region28: #{nn_lstm_forward.1} parent=1 // pred_region
      _
    $region29: #{nn_lstm_forward.1} parent=1 // pred_fallthru
      _
    // Predicated region
    $region30: #{nn_lstm_forward.1} parent=1 // pred_check
      _
    $region31: #{nn_lstm_forward.1} parent=1 // pred_check_branch
      %33 = sbr.rel (0) target = $region33
    $region32: #{nn_lstm_forward.1} parent=1 // pred_region
      _
    $region33: #{nn_lstm_forward.1} parent=1 // pred_fallthru
      _
    %v34 = vld [vmem:[%s0] sm:$0xff]
    %v35 = vld [vmem:[%s0 + $0x8] sm:$0xff]
    %v36 = vld [vmem:[%s0 + $0x10] sm:$0xff]
    %v37 = vld [vmem:[%s0 + $0x18] sm:$0xff]
    %v38 = vld [vmem:[%s0 + $0x20] sm:$0xff]
    %v39 = vld [vmem:[%s0 + $0x28] sm:$0xff]
    %v40 = vld [vmem:[%s0 + $0x30] sm:$0xff]
    %v41 = vld [vmem:[%s0 + $0x38] sm:$0xff]
    %v42 = vld [vmem:[%s3] sm:$0xff]
    %v43 = vld [vmem:[%s3 + $0x8] sm:$0xff]
    %v44 = vld [vmem:[%s3 + $0x10] sm:$0xff]
    %v45 = vld [vmem:[%s3 + $0x18] sm:$0xff]
    %v46 = vld [vmem:[%s3 + $0x20] sm:$0xff]
    %v47 = vld [vmem:[%s3 + $0x28] sm:$0xff]
    %v48 = vld [vmem:[%s3 + $0x30] sm:$0xff]
    %v49 = vld [vmem:[%s3 + $0x38] sm:$0xff]
    %v50 = vld [vmem:[%s3 + $0x40] sm:$0xff]
    %v51 = vld [vmem:[%s3 + $0x48] sm:$0xff]
    %v52 = vld [vmem:[%s3 + $0x50] sm:$0xff]
    %v53 = vld [vmem:[%s3 + $0x58] sm:$0xff]
    %v54 = vld [vmem:[%s3 + $0x60] sm:$0xff]
    %v55 = vld [vmem:[%s3 + $0x68] sm:$0xff]
    %v56 = vld [vmem:[%s3 + $0x70] sm:$0xff]
    %v57 = vld [vmem:[%s3 + $0x78] sm:$0xff]
    %v58 = vld [vmem:[%s5] sm:$0xf]
    %v60 = vlaneseq
    %v61 = vshrl.u32 %v60, 7
    %v62 = vsub.s32 0, %v61
    %v63 = vrot.slane %v58, %v62
    %v64 = vlaneseq
    %v65 = vshrl.u32 %v64, 7
    %v66 = vsub.s32 1, %v65
    %v67 = vrot.slane %v58, %v66
    %v68 = vlaneseq
    %v69 = vshrl.u32 %v68, 7
    %v70 = vsub.s32 2, %v69
    %v71 = vrot.slane %v58, %v70
    %v72 = vlaneseq
    %v73 = vshrl.u32 %v72, 7
    %v74 = vsub.s32 3, %v73
    %v75 = vrot.slane %v58, %v74
    %vm80 = vcmask 261120
    %v82 = vsel %vm80, %v34, 0
    %v85 = vsel %vm80, %v35, 0
    %v88 = vsel %vm80, %v36, 0
    %v91 = vsel %vm80, %v37, 0
    %v94 = vsel %vm80, %v38, 0
    %v97 = vsel %vm80, %v39, 0
    %v100 = vsel %vm80, %v40, 0
    %v103 = vsel %vm80, %v41, 0
    %105 = vmatprep.subr.mxu0 %v43
    %106 = vmatpush1.msra.mxu0 %v42
    %107 = vmatprep.subr.mxu0 %v47
    %108 = vmatpush1.msra.mxu0 %v46
    %109 = vmatprep.subr.mxu0 %v51
    %110 = vmatpush1.msra.mxu0 %v50
    %111 = vmatprep.subr.mxu0 %v55
    %112 = vmatpush1.msra.mxu0 %v54
    %113 = vmatprep.subr.mxu0 0.0
    %114 = vmatpush1.msra.mxu0 0.0
    %115 = vmatprep.subr.mxu0 0.0
    %116 = vmatpush1.msra.mxu0 0.0
    %117 = vmatprep.subr.mxu0 0.0
    %118 = vmatpush1.msra.mxu0 0.0
    %119 = vmatprep.subr.mxu0 0.0
    %120 = vmatpush1.msra.mxu0 0.0
    %121 = vmatprep.subr.mxu0 0.0
    %122 = vmatpush1.msra.mxu0 0.0
    %123 = vmatprep.subr.mxu0 0.0
    %124 = vmatpush1.msra.mxu0 0.0
    %125 = vmatprep.subr.mxu0 0.0
    %126 = vmatpush1.msra.mxu0 0.0
    %127 = vmatprep.subr.mxu0 0.0
    %128 = vmatpush1.msra.mxu0 0.0
    %129 = vmatprep.subr.mxu0 0.0
    %130 = vmatpush1.msra.mxu0 0.0
    %131 = vmatprep.subr.mxu0 0.0
    %132 = vmatpush1.msra.mxu0 0.0
    %133 = vmatprep.subr.mxu0 0.0
    %134 = vmatpush1.msra.mxu0 0.0
    %135 = vmatprep.subr.mxu0 0.0
    %136 = vmatpush1.msra.mxu0 0.0
    %137 = vmatprep.subr.mxu0 0.0
    %138 = vmatpush1.msra.mxu0 0.0
    %139 = vmatprep.subr.mxu0 0.0
    %140 = vmatpush1.msra.mxu0 0.0
    %141 = vmatprep.subr.mxu0 0.0
    %142 = vmatpush1.msra.mxu0 0.0
    %143 = vmatprep.subr.mxu0 0.0
    %144 = vmatpush1.msra.mxu0 0.0
    %145 = vmatprep.subr.mxu0 0.0
    %146 = vmatpush1.msra.mxu0 0.0
    %147 = vmatprep.subr.mxu0 0.0
    %148 = vmatpush1.msra.mxu0 0.0
    %149 = vmatprep.subr.mxu0 0.0
    %150 = vmatpush1.msra.mxu0 0.0
    %151 = vmatprep.subr.mxu0 0.0
    %152 = vmatpush1.msra.mxu0 0.0
    %153 = vmatprep.subr.mxu0 0.0
    %154 = vmatpush1.msra.mxu0 0.0
    %155 = vmatprep.subr.mxu0 0.0
    %156 = vmatpush1.msra.mxu0 0.0
    %157 = vmatprep.subr.mxu0 0.0
    %158 = vmatpush1.msra.mxu0 0.0
    %159 = vmatprep.subr.mxu0 0.0
    %160 = vmatpush1.msra.mxu0 0.0
    %161 = vmatprep.subr.mxu0 0.0
    %162 = vmatpush1.msra.mxu0 0.0
    %163 = vmatprep.subr.mxu0 0.0
    %164 = vmatpush1.msra.mxu0 0.0
    %165 = vmatprep.subr.mxu0 0.0
    %166 = vmatpush1.msra.mxu0 0.0
    %167 = vmatprep.subr.mxu0 0.0
    %168 = vmatpush1.msra.mxu0 0.0
    %169 = vmatprep.mubr.f32.mxu0 0.0
    %170 = vmatmul.mubr.f32.gmra.mrb[0].mxu0 %v82
    %v171 = vpop.f32.mrb[0].mxu0
    %v172 = vadd.f32 %v63, %v171
    %v173 = vpop.f32.mrb[0].mxu0
    %v174 = vadd.f32 %v67, %v173
    %175 = vmatprep.mubr.f32.mxu0 0.0
    %176 = vmatmul.mubr.f32.gmra.mrb[0].mxu0 %v85
    %v177 = vpop.f32.mrb[0].mxu0
    %v178 = vadd.f32 %v63, %v177
    %v179 = vpop.f32.mrb[0].mxu0
    %v180 = vadd.f32 %v67, %v179
    %181 = vmatprep.mubr.f32.mxu0 0.0
    %182 = vmatmul.mubr.f32.gmra.mrb[0].mxu0 %v88
    %v183 = vpop.f32.mrb[0].mxu0
    %v184 = vadd.f32 %v63, %v183
    %v185 = vpop.f32.mrb[0].mxu0
    %v186 = vadd.f32 %v67, %v185
    %187 = vmatprep.mubr.f32.mxu0 0.0
    %188 = vmatmul.mubr.f32.gmra.mrb[0].mxu0 %v91
    %v189 = vpop.f32.mrb[0].mxu0
    %v190 = vadd.f32 %v63, %v189
    %v191 = vpop.f32.mrb[0].mxu0
    %v192 = vadd.f32 %v67, %v191
    %193 = vmatprep.mubr.f32.mxu0 0.0
    %194 = vmatmul.mubr.f32.gmra.mrb[0].mxu0 %v94
    %v195 = vpop.f32.mrb[0].mxu0
    %v196 = vadd.f32 %v63, %v195
    %v197 = vpop.f32.mrb[0].mxu0
    %v198 = vadd.f32 %v67, %v197
    %199 = vmatprep.mubr.f32.mxu0 0.0
    %200 = vmatmul.mubr.f32.gmra.mrb[0].mxu0 %v97
    %v201 = vpop.f32.mrb[0].mxu0
    %v202 = vadd.f32 %v63, %v201
    %v203 = vpop.f32.mrb[0].mxu0
    %v204 = vadd.f32 %v67, %v203
    %205 = vmatprep.mubr.f32.mxu0 0.0
    %206 = vmatmul.mubr.f32.gmra.mrb[0].mxu0 %v100
    %v207 = vpop.f32.mrb[0].mxu0
    %v208 = vadd.f32 %v63, %v207
    %v209 = vpop.f32.mrb[0].mxu0
    %v210 = vadd.f32 %v67, %v209
    %211 = vmatprep.mubr.f32.mxu0 0.0
    %212 = vmatmul.mubr.f32.gmra.mrb[0].mxu0 %v103
    %v213 = vpop.f32.mrb[0].mxu0
    %v214 = vadd.f32 %v63, %v213
    %v215 = vpop.f32.mrb[0].mxu0
    %v216 = vadd.f32 %v67, %v215
    %217 = vdwg.mxu0
    %218 = vmatprep.subr.mxu0 %v45
    %219 = vmatpush1.msra.mxu0 %v44
    %220 = vmatprep.subr.mxu0 %v49
    %221 = vmatpush1.msra.mxu0 %v48
    %222 = vmatprep.subr.mxu0 %v53
    %223 = vmatpush1.msra.mxu0 %v52
    %224 = vmatprep.subr.mxu0 %v57
    %225 = vmatpush1.msra.mxu0 %v56
    %226 = vmatprep.subr.mxu0 0.0
    %227 = vmatpush1.msra.mxu0 0.0
    %228 = vmatprep.subr.mxu0 0.0
    %229 = vmatpush1.msra.mxu0 0.0
    %230 = vmatprep.subr.mxu0 0.0
    %231 = vmatpush1.msra.mxu0 0.0
    %232 = vmatprep.subr.mxu0 0.0
    %233 = vmatpush1.msra.mxu0 0.0
    %234 = vmatprep.subr.mxu0 0.0
    %235 = vmatpush1.msra.mxu0 0.0
    %236 = vmatprep.subr.mxu0 0.0
    %237 = vmatpush1.msra.mxu0 0.0
    %238 = vmatprep.subr.mxu0 0.0
    %239 = vmatpush1.msra.mxu0 0.0
    %240 = vmatprep.subr.mxu0 0.0
    %241 = vmatpush1.msra.mxu0 0.0
    %242 = vmatprep.subr.mxu0 0.0
    %243 = vmatpush1.msra.mxu0 0.0
    %244 = vmatprep.subr.mxu0 0.0
    %245 = vmatpush1.msra.mxu0 0.0
    %246 = vmatprep.subr.mxu0 0.0
    %247 = vmatpush1.msra.mxu0 0.0
    %248 = vmatprep.subr.mxu0 0.0
    %249 = vmatpush1.msra.mxu0 0.0
    %250 = vmatprep.subr.mxu0 0.0
    %251 = vmatpush1.msra.mxu0 0.0
    %252 = vmatprep.subr.mxu0 0.0
    %253 = vmatpush1.msra.mxu0 0.0
    %254 = vmatprep.subr.mxu0 0.0
    %255 = vmatpush1.msra.mxu0 0.0
    %256 = vmatprep.subr.mxu0 0.0
    %257 = vmatpush1.msra.mxu0 0.0
    %258 = vmatprep.subr.mxu0 0.0
    %259 = vmatpush1.msra.mxu0 0.0
    %260 = vmatprep.subr.mxu0 0.0
    %261 = vmatpush1.msra.mxu0 0.0
    %262 = vmatprep.subr.mxu0 0.0
    %263 = vmatpush1.msra.mxu0 0.0
    %264 = vmatprep.subr.mxu0 0.0
    %265 = vmatpush1.msra.mxu0 0.0
    %266 = vmatprep.subr.mxu0 0.0
    %267 = vmatpush1.msra.mxu0 0.0
    %268 = vmatprep.subr.mxu0 0.0
    %269 = vmatpush1.msra.mxu0 0.0
    %270 = vmatprep.subr.mxu0 0.0
    %271 = vmatpush1.msra.mxu0 0.0
    %272 = vmatprep.subr.mxu0 0.0
    %273 = vmatpush1.msra.mxu0 0.0
    %274 = vmatprep.subr.mxu0 0.0
    %275 = vmatpush1.msra.mxu0 0.0
    %276 = vmatprep.subr.mxu0 0.0
    %277 = vmatpush1.msra.mxu0 0.0
    %278 = vmatprep.subr.mxu0 0.0
    %279 = vmatpush1.msra.mxu0 0.0
    %280 = vmatprep.subr.mxu0 0.0
    %281 = vmatpush1.msra.mxu0 0.0
    %282 = vmatprep.mubr.f32.mxu0 0.0
    %283 = vmatmul.mubr.f32.gmra.mrb[0].mxu0 %v82
    %v284 = vpop.f32.mrb[0].mxu0
    %v285 = vadd.f32 %v71, %v284
    %v286 = vpop.f32.mrb[0].mxu0
    %v287 = vadd.f32 %v75, %v286
    %288 = vmatprep.mubr.f32.mxu0 0.0
    %289 = vmatmul.mubr.f32.gmra.mrb[0].mxu0 %v85
    %v290 = vpop.f32.mrb[0].mxu0
    %v291 = vadd.f32 %v71, %v290
    %v292 = vpop.f32.mrb[0].mxu0
    %v293 = vadd.f32 %v75, %v292
    %294 = vmatprep.mubr.f32.mxu0 0.0
    %295 = vmatmul.mubr.f32.gmra.mrb[0].mxu0 %v88
    %v296 = vpop.f32.mrb[0].mxu0
    %v297 = vadd.f32 %v71, %v296
    %v298 = vpop.f32.mrb[0].mxu0
    %v299 = vadd.f32 %v75, %v298
    %300 = vmatprep.mubr.f32.mxu0 0.0
    %301 = vmatmul.mubr.f32.gmra.mrb[0].mxu0 %v91
    %v302 = vpop.f32.mrb[0].mxu0
    %v303 = vadd.f32 %v71, %v302
    %v304 = vpop.f32.mrb[0].mxu0
    %v305 = vadd.f32 %v75, %v304
    %306 = vmatprep.mubr.f32.mxu0 0.0
    %307 = vmatmul.mubr.f32.gmra.mrb[0].mxu0 %v94
    %v308 = vpop.f32.mrb[0].mxu0
    %v309 = vadd.f32 %v71, %v308
    %v310 = vpop.f32.mrb[0].mxu0
    %v311 = vadd.f32 %v75, %v310
    %312 = vmatprep.mubr.f32.mxu0 0.0
    %313 = vmatmul.mubr.f32.gmra.mrb[0].mxu0 %v97
    %v314 = vpop.f32.mrb[0].mxu0
    %v315 = vadd.f32 %v71, %v314
    %v316 = vpop.f32.mrb[0].mxu0
    %v317 = vadd.f32 %v75, %v316
    %318 = vmatprep.mubr.f32.mxu0 0.0
    %319 = vmatmul.mubr.f32.gmra.mrb[0].mxu0 %v100
    %v320 = vpop.f32.mrb[0].mxu0
    %v321 = vadd.f32 %v71, %v320
    %v322 = vpop.f32.mrb[0].mxu0
    %v323 = vadd.f32 %v75, %v322
    %324 = vmatprep.mubr.f32.mxu0 0.0
    %325 = vmatmul.mubr.f32.gmra.mrb[0].mxu0 %v103
    %v326 = vpop.f32.mrb[0].mxu0
    %v327 = vadd.f32 %v71, %v326
    %v328 = vpop.f32.mrb[0].mxu0
    %v329 = vadd.f32 %v75, %v328
    %330 = vdwg.mxu0
    %331 = vst [vmem:[#allocation2] sm:$0xff] %v172
    %332 = vst [vmem:[#allocation2 + $0x8] sm:$0xff] %v174
    %333 = vst [vmem:[#allocation2 + $0x10] sm:$0xff] %v285
    %334 = vst [vmem:[#allocation2 + $0x18] sm:$0xff] %v287
    %335 = vst [vmem:[#allocation2 + $0x20] sm:$0xff] %v178
    %336 = vst [vmem:[#allocation2 + $0x28] sm:$0xff] %v180
    %337 = vst [vmem:[#allocation2 + $0x30] sm:$0xff] %v291
    %338 = vst [vmem:[#allocation2 + $0x38] sm:$0xff] %v293
    %339 = vst [vmem:[#allocation2 + $0x40] sm:$0xff] %v184
    %340 = vst [vmem:[#allocation2 + $0x48] sm:$0xff] %v186
    %341 = vst [vmem:[#allocation2 + $0x50] sm:$0xff] %v297
    %342 = vst [vmem:[#allocation2 + $0x58] sm:$0xff] %v299
    %343 = vst [vmem:[#allocation2 + $0x60] sm:$0xff] %v190
    %344 = vst [vmem:[#allocation2 + $0x68] sm:$0xff] %v192
    %345 = vst [vmem:[#allocation2 + $0x70] sm:$0xff] %v303
    %346 = vst [vmem:[#allocation2 + $0x78] sm:$0xff] %v305
    %347 = vst [vmem:[#allocation2 + $0x80] sm:$0xff] %v196
    %348 = vst [vmem:[#allocation2 + $0x88] sm:$0xff] %v198
    %349 = vst [vmem:[#allocation2 + $0x90] sm:$0xff] %v309
    %350 = vst [vmem:[#allocation2 + $0x98] sm:$0xff] %v311
    %351 = vst [vmem:[#allocation2 + $0xa0] sm:$0xff] %v202
    %352 = vst [vmem:[#allocation2 + $0xa8] sm:$0xff] %v204
    %353 = vst [vmem:[#allocation2 + $0xb0] sm:$0xff] %v315
    %354 = vst [vmem:[#allocation2 + $0xb8] sm:$0xff] %v317
    %355 = vst [vmem:[#allocation2 + $0xc0] sm:$0xff] %v208
    %356 = vst [vmem:[#allocation2 + $0xc8] sm:$0xff] %v210
    %357 = vst [vmem:[#allocation2 + $0xd0] sm:$0xff] %v321
    %358 = vst [vmem:[#allocation2 + $0xd8] sm:$0xff] %v323
    %359 = vst [vmem:[#allocation2 + $0xe0] sm:$0xff] %v214
    %360 = vst [vmem:[#allocation2 + $0xe8] sm:$0xff] %v216
    %361 = vst [vmem:[#allocation2 + $0xf0] sm:$0xff] %v327
    %362 = vst [vmem:[#allocation2 + $0xf8] sm:$0xff] %v329
    %v363 = vld [vmem:[%s1] sm:$0xff]
    %v364 = vld [vmem:[%s2] sm:$0xff]
    %s365 = smul.u32 0, 4
    %s366 = smul.addr %s365, 8
    %s367 = scalar_lea.vmem [#allocation2], %s366
    %v368 = vld [vmem:[%s367] sm:$0xff]
    %v369 = vld [vmem:[%s367 + $0x8] sm:$0xff]
    %v370 = vld [vmem:[%s367 + $0x10] sm:$0xff]
    %v371 = vld [vmem:[%s367 + $0x18] sm:$0xff]
    %v372 = vld [vmem:[%s4] sm:$0xff]
    %v373 = vld [vmem:[%s4 + $0x8] sm:$0xff]
    %v374 = vld [vmem:[%s4 + $0x10] sm:$0xff]
    %v375 = vld [vmem:[%s4 + $0x18] sm:$0xff]
    %v376 = vld [vmem:[%s4 + $0x20] sm:$0xff]
    %v377 = vld [vmem:[%s4 + $0x28] sm:$0xff]
    %v378 = vld [vmem:[%s4 + $0x30] sm:$0xff]
    %v379 = vld [vmem:[%s4 + $0x38] sm:$0xff]
    %v380 = vld [vmem:[%s4 + $0x40] sm:$0xff]
    %v381 = vld [vmem:[%s4 + $0x48] sm:$0xff]
    %v382 = vld [vmem:[%s4 + $0x50] sm:$0xff]
    %v383 = vld [vmem:[%s4 + $0x58] sm:$0xff]
    %v384 = vld [vmem:[%s4 + $0x60] sm:$0xff]
    %v385 = vld [vmem:[%s4 + $0x68] sm:$0xff]
    %v386 = vld [vmem:[%s4 + $0x70] sm:$0xff]
    %v387 = vld [vmem:[%s4 + $0x78] sm:$0xff]
    %v388 = vld [vmem:[%s4 + $0x80] sm:$0xff]
    %v389 = vld [vmem:[%s4 + $0x88] sm:$0xff]
    %v390 = vld [vmem:[%s4 + $0x90] sm:$0xff]
    %v391 = vld [vmem:[%s4 + $0x98] sm:$0xff]
    %v392 = vld [vmem:[%s4 + $0xa0] sm:$0xff]
    %v393 = vld [vmem:[%s4 + $0xa8] sm:$0xff]
    %v394 = vld [vmem:[%s4 + $0xb0] sm:$0xff]
    %v395 = vld [vmem:[%s4 + $0xb8] sm:$0xff]
    %v396 = vld [vmem:[%s4 + $0xc0] sm:$0xff]
    %v397 = vld [vmem:[%s4 + $0xc8] sm:$0xff]
    %v398 = vld [vmem:[%s4 + $0xd0] sm:$0xff]
    %v399 = vld [vmem:[%s4 + $0xd8] sm:$0xff]
    %v400 = vld [vmem:[%s4 + $0xe0] sm:$0xff]
    %v401 = vld [vmem:[%s4 + $0xe8] sm:$0xff]
    %v402 = vld [vmem:[%s4 + $0xf0] sm:$0xff]
    %v403 = vld [vmem:[%s4 + $0xf8] sm:$0xff]
    %v404 = vld [vmem:[%s4 + $0x100] sm:$0xff]
    %v405 = vld [vmem:[%s4 + $0x108] sm:$0xff]
    %v406 = vld [vmem:[%s4 + $0x110] sm:$0xff]
    %v407 = vld [vmem:[%s4 + $0x118] sm:$0xff]
    %v408 = vld [vmem:[%s4 + $0x120] sm:$0xff]
    %v409 = vld [vmem:[%s4 + $0x128] sm:$0xff]
    %v410 = vld [vmem:[%s4 + $0x130] sm:$0xff]
    %v411 = vld [vmem:[%s4 + $0x138] sm:$0xff]
    %v412 = vld [vmem:[%s4 + $0x140] sm:$0xff]
    %v413 = vld [vmem:[%s4 + $0x148] sm:$0xff]
    %v414 = vld [vmem:[%s4 + $0x150] sm:$0xff]
    %v415 = vld [vmem:[%s4 + $0x158] sm:$0xff]
    %v416 = vld [vmem:[%s4 + $0x160] sm:$0xff]
    %v417 = vld [vmem:[%s4 + $0x168] sm:$0xff]
    %v418 = vld [vmem:[%s4 + $0x170] sm:$0xff]
    %v419 = vld [vmem:[%s4 + $0x178] sm:$0xff]
    %v420 = vld [vmem:[%s4 + $0x180] sm:$0xff]
    %v421 = vld [vmem:[%s4 + $0x188] sm:$0xff]
    %v422 = vld [vmem:[%s4 + $0x190] sm:$0xff]
    %v423 = vld [vmem:[%s4 + $0x198] sm:$0xff]
    %v424 = vld [vmem:[%s4 + $0x1a0] sm:$0xff]
    %v425 = vld [vmem:[%s4 + $0x1a8] sm:$0xff]
    %v426 = vld [vmem:[%s4 + $0x1b0] sm:$0xff]
    %v427 = vld [vmem:[%s4 + $0x1b8] sm:$0xff]
    %v428 = vld [vmem:[%s4 + $0x1c0] sm:$0xff]
    %v429 = vld [vmem:[%s4 + $0x1c8] sm:$0xff]
    %v430 = vld [vmem:[%s4 + $0x1d0] sm:$0xff]
    %v431 = vld [vmem:[%s4 + $0x1d8] sm:$0xff]
    %v432 = vld [vmem:[%s4 + $0x1e0] sm:$0xff]
    %v433 = vld [vmem:[%s4 + $0x1e8] sm:$0xff]
    %v434 = vld [vmem:[%s4 + $0x1f0] sm:$0xff]
    %v435 = vld [vmem:[%s4 + $0x1f8] sm:$0xff]
    %436 = vmatprep.subr.mxu0 %v373
    %437 = vmatpush1.msra.mxu0 %v372
    %438 = vmatprep.subr.mxu0 %v377
    %439 = vmatpush1.msra.mxu0 %v376
    %440 = vmatprep.subr.mxu0 %v381
    %441 = vmatpush1.msra.mxu0 %v380
    %442 = vmatprep.subr.mxu0 %v385
    %443 = vmatpush1.msra.mxu0 %v384
    %444 = vmatprep.subr.mxu0 %v389
    %445 = vmatpush1.msra.mxu0 %v388
    %446 = vmatprep.subr.mxu0 %v393
    %447 = vmatpush1.msra.mxu0 %v392
    %448 = vmatprep.subr.mxu0 %v397
    %449 = vmatpush1.msra.mxu0 %v396
    %450 = vmatprep.subr.mxu0 %v401
    %451 = vmatpush1.msra.mxu0 %v400
    %452 = vmatprep.subr.mxu0 %v405
    %453 = vmatpush1.msra.mxu0 %v404
    %454 = vmatprep.subr.mxu0 %v409
    %455 = vmatpush1.msra.mxu0 %v408
    %456 = vmatprep.subr.mxu0 %v413
    %457 = vmatpush1.msra.mxu0 %v412
    %458 = vmatprep.subr.mxu0 %v417
    %459 = vmatpush1.msra.mxu0 %v416
    %460 = vmatprep.subr.mxu0 %v421
    %461 = vmatpush1.msra.mxu0 %v420
    %462 = vmatprep.subr.mxu0 %v425
    %463 = vmatpush1.msra.mxu0 %v424
    %464 = vmatprep.subr.mxu0 %v429
    %465 = vmatpush1.msra.mxu0 %v428
    %466 = vmatprep.subr.mxu0 %v433
    %467 = vmatpush1.msra.mxu0 %v432
    %468 = vmatprep.subr.mxu0 0.0
    %469 = vmatpush1.msra.mxu0 0.0
    %470 = vmatprep.subr.mxu0 0.0
    %471 = vmatpush1.msra.mxu0 0.0
    %472 = vmatprep.subr.mxu0 0.0
    %473 = vmatpush1.msra.mxu0 0.0
    %474 = vmatprep.subr.mxu0 0.0
    %475 = vmatpush1.msra.mxu0 0.0
    %476 = vmatprep.subr.mxu0 0.0
    %477 = vmatpush1.msra.mxu0 0.0
    %478 = vmatprep.subr.mxu0 0.0
    %479 = vmatpush1.msra.mxu0 0.0
    %480 = vmatprep.subr.mxu0 0.0
    %481 = vmatpush1.msra.mxu0 0.0
    %482 = vmatprep.subr.mxu0 0.0
    %483 = vmatpush1.msra.mxu0 0.0
    %484 = vmatprep.subr.mxu0 0.0
    %485 = vmatpush1.msra.mxu0 0.0
    %486 = vmatprep.subr.mxu0 0.0
    %487 = vmatpush1.msra.mxu0 0.0
    %488 = vmatprep.subr.mxu0 0.0
    %489 = vmatpush1.msra.mxu0 0.0
    %490 = vmatprep.subr.mxu0 0.0
    %491 = vmatpush1.msra.mxu0 0.0
    %492 = vmatprep.subr.mxu0 0.0
    %493 = vmatpush1.msra.mxu0 0.0
    %494 = vmatprep.subr.mxu0 0.0
    %495 = vmatpush1.msra.mxu0 0.0
    %496 = vmatprep.subr.mxu0 0.0
    %497 = vmatpush1.msra.mxu0 0.0
    %498 = vmatprep.subr.mxu0 0.0
    %499 = vmatpush1.msra.mxu0 0.0
    %500 = vmatprep.mubr.f32.mxu0 0.0
    %501 = vmatmul.mubr.f32.gmra.mrb[0].mxu0 %v363
    %v502 = vpop.f32.mrb[0].mxu0
    %v503 = vadd.f32 0.0, %v502
    %v504 = vpop.f32.mrb[0].mxu0
    %v505 = vadd.f32 0.0, %v504
    %506 = vdwg.mxu0
    %507 = vmatprep.subr.mxu0 %v375
    %508 = vmatpush1.msra.mxu0 %v374
    %509 = vmatprep.subr.mxu0 %v379
    %510 = vmatpush1.msra.mxu0 %v378
    %511 = vmatprep.subr.mxu0 %v383
    %512 = vmatpush1.msra.mxu0 %v382
    %513 = vmatprep.subr.mxu0 %v387
    %514 = vmatpush1.msra.mxu0 %v386
    %515 = vmatprep.subr.mxu0 %v391
    %516 = vmatpush1.msra.mxu0 %v390
    %517 = vmatprep.subr.mxu0 %v395
    %518 = vmatpush1.msra.mxu0 %v394
    %519 = vmatprep.subr.mxu0 %v399
    %520 = vmatpush1.msra.mxu0 %v398
    %521 = vmatprep.subr.mxu0 %v403
    %522 = vmatpush1.msra.mxu0 %v402
    %523 = vmatprep.subr.mxu0 %v407
    %524 = vmatpush1.msra.mxu0 %v406
    %525 = vmatprep.subr.mxu0 %v411
    %526 = vmatpush1.msra.mxu0 %v410
    %527 = vmatprep.subr.mxu0 %v415
    %528 = vmatpush1.msra.mxu0 %v414
    %529 = vmatprep.subr.mxu0 %v419
    %530 = vmatpush1.msra.mxu0 %v418
    %531 = vmatprep.subr.mxu0 %v423
    %532 = vmatpush1.msra.mxu0 %v422
    %533 = vmatprep.subr.mxu0 %v427
    %534 = vmatpush1.msra.mxu0 %v426
    %535 = vmatprep.subr.mxu0 %v431
    %536 = vmatpush1.msra.mxu0 %v430
    %537 = vmatprep.subr.mxu0 %v435
    %538 = vmatpush1.msra.mxu0 %v434
    %539 = vmatprep.subr.mxu0 0.0
    %540 = vmatpush1.msra.mxu0 0.0
    %541 = vmatprep.subr.mxu0 0.0
    %542 = vmatpush1.msra.mxu0 0.0
    %543 = vmatprep.subr.mxu0 0.0
    %544 = vmatpush1.msra.mxu0 0.0
    %545 = vmatprep.subr.mxu0 0.0
    %546 = vmatpush1.msra.mxu0 0.0
    %547 = vmatprep.subr.mxu0 0.0
    %548 = vmatpush1.msra.mxu0 0.0
    %549 = vmatprep.subr.mxu0 0.0
    %550 = vmatpush1.msra.mxu0 0.0
    %551 = vmatprep.subr.mxu0 0.0
    %552 = vmatpush1.msra.mxu0 0.0
    %553 = vmatprep.subr.mxu0 0.0
    %554 = vmatpush1.msra.mxu0 0.0
    %555 = vmatprep.subr.mxu0 0.0
    %556 = vmatpush1.msra.mxu0 0.0
    %557 = vmatprep.subr.mxu0 0.0
    %558 = vmatpush1.msra.mxu0 0.0
    %559 = vmatprep.subr.mxu0 0.0
    %560 = vmatpush1.msra.mxu0 0.0
    %561 = vmatprep.subr.mxu0 0.0
    %562 = vmatpush1.msra.mxu0 0.0
    %563 = vmatprep.subr.mxu0 0.0
    %564 = vmatpush1.msra.mxu0 0.0
    %565 = vmatprep.subr.mxu0 0.0
    %566 = vmatpush1.msra.mxu0 0.0
    %567 = vmatprep.subr.mxu0 0.0
    %568 = vmatpush1.msra.mxu0 0.0
    %569 = vmatprep.subr.mxu0 0.0
    %570 = vmatpush1.msra.mxu0 0.0
    %571 = vmatprep.mubr.f32.mxu0 0.0
    %572 = vmatmul.mubr.f32.gmra.mrb[0].mxu0 %v363
    %v573 = vpop.f32.mrb[0].mxu0
    %v574 = vadd.f32 0.0, %v573
    %v575 = vpop.f32.mrb[0].mxu0
    %v576 = vadd.f32 0.0, %v575
    %577 = vdwg.mxu0
    %v578 = vadd.f32 %v368, %v503
    %v579 = vadd.f32 %v369, %v505
    %v580 = vadd.f32 %v370, %v574
    %v581 = vadd.f32 %v371, %v576
    %v582 = vxor.u32 %v578, 2147483648
    %v583 = vxor.u32 %v579, 2147483648
    %v584 = vxor.u32 %v580, 2147483648
    %v585 = vmul.f32 %v582, 1.442695
    %v586 = vpow.pop %v585
    %v587 = vmul.f32 %v583, 1.442695
    %v588 = vpow.pop %v587
    %v589 = vmul.f32 %v584, 1.442695
    %v590 = vpow.pop %v589
    %v591 = vadd.f32 %v586, 1.0
    %v592 = vadd.f32 %v588, 1.0
    %v593 = vadd.f32 %v590, 1.0
    %v594 = vrcp.pop %v591
    %v595 = vmul.f32 1.0, %v594
    %v596 = vrcp.pop %v592
    %v597 = vmul.f32 1.0, %v596
    %v598 = vrcp.pop %v593
    %v599 = vmul.f32 1.0, %v598
    %v600 = vtanh.pop %v581
    %v601 = vmul.f32 %v597, %v364
    %v602 = vmul.f32 %v595, %v600
    %v603 = vadd.f32 %v601, %v602
    %v604 = vtanh.pop %v603
    %v605 = vmul.f32 %v599, %v604
    %s606 = smul.u32 1, 4
    %s607 = smul.addr %s606, 8
    %s608 = scalar_lea.vmem [#allocation2], %s607
    %v609 = vld [vmem:[%s608] sm:$0xff]
    %v610 = vld [vmem:[%s608 + $0x8] sm:$0xff]
    %v611 = vld [vmem:[%s608 + $0x10] sm:$0xff]
    %v612 = vld [vmem:[%s608 + $0x18] sm:$0xff]
    %613 = vmatprep.subr.mxu0 %v373
    %614 = vmatpush1.msra.mxu0 %v372
    %615 = vmatprep.subr.mxu0 %v377
    %616 = vmatpush1.msra.mxu0 %v376
    %617 = vmatprep.subr.mxu0 %v381
    %618 = vmatpush1.msra.mxu0 %v380
    %619 = vmatprep.subr.mxu0 %v385
    %620 = vmatpush1.msra.mxu0 %v384
    %621 = vmatprep.subr.mxu0 %v389
    %622 = vmatpush1.msra.mxu0 %v388
    %623 = vmatprep.subr.mxu0 %v393
    %624 = vmatpush1.msra.mxu0 %v392
    %625 = vmatprep.subr.mxu0 %v397
    %626 = vmatpush1.msra.mxu0 %v396
    %627 = vmatprep.subr.mxu0 %v401
    %628 = vmatpush1.msra.mxu0 %v400
    %629 = vmatprep.subr.mxu0 %v405
    %630 = vmatpush1.msra.mxu0 %v404
    %631 = vmatprep.subr.mxu0 %v409
    %632 = vmatpush1.msra.mxu0 %v408
    %633 = vmatprep.subr.mxu0 %v413
    %634 = vmatpush1.msra.mxu0 %v412
    %635 = vmatprep.subr.mxu0 %v417
    %636 = vmatpush1.msra.mxu0 %v416
    %637 = vmatprep.subr.mxu0 %v421
    %638 = vmatpush1.msra.mxu0 %v420
    %639 = vmatprep.subr.mxu0 %v425
    %640 = vmatpush1.msra.mxu0 %v424
    %641 = vmatprep.subr.mxu0 %v429
    %642 = vmatpush1.msra.mxu0 %v428
    %643 = vmatprep.subr.mxu0 %v433
    %644 = vmatpush1.msra.mxu0 %v432
    %645 = vmatprep.subr.mxu0 0.0
    %646 = vmatpush1.msra.mxu0 0.0
    %647 = vmatprep.subr.mxu0 0.0
    %648 = vmatpush1.msra.mxu0 0.0
    %649 = vmatprep.subr.mxu0 0.0
    %650 = vmatpush1.msra.mxu0 0.0
    %651 = vmatprep.subr.mxu0 0.0
    %652 = vmatpush1.msra.mxu0 0.0
    %653 = vmatprep.subr.mxu0 0.0
    %654 = vmatpush1.msra.mxu0 0.0
    %655 = vmatprep.subr.mxu0 0.0
    %656 = vmatpush1.msra.mxu0 0.0
    %657 = vmatprep.subr.mxu0 0.0
    %658 = vmatpush1.msra.mxu0 0.0
    %659 = vmatprep.subr.mxu0 0.0
    %660 = vmatpush1.msra.mxu0 0.0
    %661 = vmatprep.subr.mxu0 0.0
    %662 = vmatpush1.msra.mxu0 0.0
    %663 = vmatprep.subr.mxu0 0.0
    %664 = vmatpush1.msra.mxu0 0.0
    %665 = vmatprep.subr.mxu0 0.0
    %666 = vmatpush1.msra.mxu0 0.0
    %667 = vmatprep.subr.mxu0 0.0
    %668 = vmatpush1.msra.mxu0 0.0
    %669 = vmatprep.subr.mxu0 0.0
    %670 = vmatpush1.msra.mxu0 0.0
    %671 = vmatprep.subr.mxu0 0.0
    %672 = vmatpush1.msra.mxu0 0.0
    %673 = vmatprep.subr.mxu0 0.0
    %674 = vmatpush1.msra.mxu0 0.0
    %675 = vmatprep.subr.mxu0 0.0
    %676 = vmatpush1.msra.mxu0 0.0
    %677 = vmatprep.mubr.f32.mxu0 0.0
    %678 = vmatmul.mubr.f32.gmra.mrb[0].mxu0 %v605
    %v679 = vpop.f32.mrb[0].mxu0
    %v680 = vadd.f32 0.0, %v679
    %v681 = vpop.f32.mrb[0].mxu0
    %v682 = vadd.f32 0.0, %v681
    %683 = vdwg.mxu0
    %684 = vmatprep.subr.mxu0 %v375
    %685 = vmatpush1.msra.mxu0 %v374
    %686 = vmatprep.subr.mxu0 %v379
    %687 = vmatpush1.msra.mxu0 %v378
    %688 = vmatprep.subr.mxu0 %v383
    %689 = vmatpush1.msra.mxu0 %v382
    %690 = vmatprep.subr.mxu0 %v387
    %691 = vmatpush1.msra.mxu0 %v386
    %692 = vmatprep.subr.mxu0 %v391
    %693 = vmatpush1.msra.mxu0 %v390
    %694 = vmatprep.subr.mxu0 %v395
    %695 = vmatpush1.msra.mxu0 %v394
    %696 = vmatprep.subr.mxu0 %v399
    %697 = vmatpush1.msra.mxu0 %v398
    %698 = vmatprep.subr.mxu0 %v403
    %699 = vmatpush1.msra.mxu0 %v402
    %700 = vmatprep.subr.mxu0 %v407
    %701 = vmatpush1.msra.mxu0 %v406
    %702 = vmatprep.subr.mxu0 %v411
    %703 = vmatpush1.msra.mxu0 %v410
    %704 = vmatprep.subr.mxu0 %v415
    %705 = vmatpush1.msra.mxu0 %v414
    %706 = vmatprep.subr.mxu0 %v419
    %707 = vmatpush1.msra.mxu0 %v418
    %708 = vmatprep.subr.mxu0 %v423
    %709 = vmatpush1.msra.mxu0 %v422
    %710 = vmatprep.subr.mxu0 %v427
    %711 = vmatpush1.msra.mxu0 %v426
    %712 = vmatprep.subr.mxu0 %v431
    %713 = vmatpush1.msra.mxu0 %v430
    %714 = vmatprep.subr.mxu0 %v435
    %715 = vmatpush1.msra.mxu0 %v434
    %716 = vmatprep.subr.mxu0 0.0
    %717 = vmatpush1.msra.mxu0 0.0
    %718 = vmatprep.subr.mxu0 0.0
    %719 = vmatpush1.msra.mxu0 0.0
    %720 = vmatprep.subr.mxu0 0.0
    %721 = vmatpush1.msra.mxu0 0.0
    %722 = vmatprep.subr.mxu0 0.0
    %723 = vmatpush1.msra.mxu0 0.0
    %724 = vmatprep.subr.mxu0 0.0
    %725 = vmatpush1.msra.mxu0 0.0
    %726 = vmatprep.subr.mxu0 0.0
    %727 = vmatpush1.msra.mxu0 0.0
    %728 = vmatprep.subr.mxu0 0.0
    %729 = vmatpush1.msra.mxu0 0.0
    %730 = vmatprep.subr.mxu0 0.0
    %731 = vmatpush1.msra.mxu0 0.0
    %732 = vmatprep.subr.mxu0 0.0
    %733 = vmatpush1.msra.mxu0 0.0
    %734 = vmatprep.subr.mxu0 0.0
    %735 = vmatpush1.msra.mxu0 0.0
    %736 = vmatprep.subr.mxu0 0.0
    %737 = vmatpush1.msra.mxu0 0.0
    %738 = vmatprep.subr.mxu0 0.0
    %739 = vmatpush1.msra.mxu0 0.0
    %740 = vmatprep.subr.mxu0 0.0
    %741 = vmatpush1.msra.mxu0 0.0
    %742 = vmatprep.subr.mxu0 0.0
    %743 = vmatpush1.msra.mxu0 0.0
    %744 = vmatprep.subr.mxu0 0.0
    %745 = vmatpush1.msra.mxu0 0.0
    %746 = vmatprep.subr.mxu0 0.0
    %747 = vmatpush1.msra.mxu0 0.0
    %748 = vmatprep.mubr.f32.mxu0 0.0
    %749 = vmatmul.mubr.f32.gmra.mrb[0].mxu0 %v605
    %v750 = vpop.f32.mrb[0].mxu0
    %v751 = vadd.f32 0.0, %v750
    %v752 = vpop.f32.mrb[0].mxu0
    %v753 = vadd.f32 0.0, %v752
    %754 = vdwg.mxu0
    %v755 = vadd.f32 %v609, %v680
    %v756 = vadd.f32 %v610, %v682
    %v757 = vadd.f32 %v611, %v751
    %v758 = vadd.f32 %v612, %v753
    %v759 = vxor.u32 %v755, 2147483648
    %v760 = vxor.u32 %v756, 2147483648
    %v761 = vxor.u32 %v757, 2147483648
    %v762 = vmul.f32 %v759, 1.442695
    %v763 = vpow.pop %v762
    %v764 = vmul.f32 %v760, 1.442695
    %v765 = vpow.pop %v764
    %v766 = vmul.f32 %v761, 1.442695
    %v767 = vpow.pop %v766
    %v768 = vadd.f32 %v763, 1.0
    %v769 = vadd.f32 %v765, 1.0
    %v770 = vadd.f32 %v767, 1.0
    %v771 = vrcp.pop %v768
    %v772 = vmul.f32 1.0, %v771
    %v773 = vrcp.pop %v769
    %v774 = vmul.f32 1.0, %v773
    %v775 = vrcp.pop %v770
    %v776 = vmul.f32 1.0, %v775
    %v777 = vtanh.pop %v758
    %v778 = vmul.f32 %v774, %v603
    %v779 = vmul.f32 %v772, %v777
    %v780 = vadd.f32 %v778, %v779
    %v781 = vtanh.pop %v780
    %v782 = vmul.f32 %v776, %v781
    %s783 = smul.u32 2, 4
    %s784 = smul.addr %s783, 8
    %s785 = scalar_lea.vmem [#allocation2], %s784
    %v786 = vld [vmem:[%s785] sm:$0xff]
    %v787 = vld [vmem:[%s785 + $0x8] sm:$0xff]
    %v788 = vld [vmem:[%s785 + $0x10] sm:$0xff]
    %v789 = vld [vmem:[%s785 + $0x18] sm:$0xff]
    %790 = vmatprep.subr.mxu0 %v373
    %791 = vmatpush1.msra.mxu0 %v372
    %792 = vmatprep.subr.mxu0 %v377
    %793 = vmatpush1.msra.mxu0 %v376
    %794 = vmatprep.subr.mxu0 %v381
    %795 = vmatpush1.msra.mxu0 %v380
    %796 = vmatprep.subr.mxu0 %v385
    %797 = vmatpush1.msra.mxu0 %v384
    %798 = vmatprep.subr.mxu0 %v389
    %799 = vmatpush1.msra.mxu0 %v388
    %800 = vmatprep.subr.mxu0 %v393
    %801 = vmatpush1.msra.mxu0 %v392
    %802 = vmatprep.subr.mxu0 %v397
    %803 = vmatpush1.msra.mxu0 %v396
    %804 = vmatprep.subr.mxu0 %v401
    %805 = vmatpush1.msra.mxu0 %v400
    %806 = vmatprep.subr.mxu0 %v405
    %807 = vmatpush1.msra.mxu0 %v404
    %808 = vmatprep.subr.mxu0 %v409
    %809 = vmatpush1.msra.mxu0 %v408
    %810 = vmatprep.subr.mxu0 %v413
    %811 = vmatpush1.msra.mxu0 %v412
    %812 = vmatprep.subr.mxu0 %v417
    %813 = vmatpush1.msra.mxu0 %v416
    %814 = vmatprep.subr.mxu0 %v421
    %815 = vmatpush1.msra.mxu0 %v420
    %816 = vmatprep.subr.mxu0 %v425
    %817 = vmatpush1.msra.mxu0 %v424
    %818 = vmatprep.subr.mxu0 %v429
    %819 = vmatpush1.msra.mxu0 %v428
    %820 = vmatprep.subr.mxu0 %v433
    %821 = vmatpush1.msra.mxu0 %v432
    %822 = vmatprep.subr.mxu0 0.0
    %823 = vmatpush1.msra.mxu0 0.0
    %824 = vmatprep.subr.mxu0 0.0
    %825 = vmatpush1.msra.mxu0 0.0
    %826 = vmatprep.subr.mxu0 0.0
    %827 = vmatpush1.msra.mxu0 0.0
    %828 = vmatprep.subr.mxu0 0.0
    %829 = vmatpush1.msra.mxu0 0.0
    %830 = vmatprep.subr.mxu0 0.0
    %831 = vmatpush1.msra.mxu0 0.0
    %832 = vmatprep.subr.mxu0 0.0
    %833 = vmatpush1.msra.mxu0 0.0
    %834 = vmatprep.subr.mxu0 0.0
    %835 = vmatpush1.msra.mxu0 0.0
    %836 = vmatprep.subr.mxu0 0.0
    %837 = vmatpush1.msra.mxu0 0.0
    %838 = vmatprep.subr.mxu0 0.0
    %839 = vmatpush1.msra.mxu0 0.0
    %840 = vmatprep.subr.mxu0 0.0
    %841 = vmatpush1.msra.mxu0 0.0
    %842 = vmatprep.subr.mxu0 0.0
    %843 = vmatpush1.msra.mxu0 0.0
    %844 = vmatprep.subr.mxu0 0.0
    %845 = vmatpush1.msra.mxu0 0.0
    %846 = vmatprep.subr.mxu0 0.0
    %847 = vmatpush1.msra.mxu0 0.0
    %848 = vmatprep.subr.mxu0 0.0
    %849 = vmatpush1.msra.mxu0 0.0
    %850 = vmatprep.subr.mxu0 0.0
    %851 = vmatpush1.msra.mxu0 0.0
    %852 = vmatprep.subr.mxu0 0.0
    %853 = vmatpush1.msra.mxu0 0.0
    %854 = vmatprep.mubr.f32.mxu0 0.0
    %855 = vmatmul.mubr.f32.gmra.mrb[0].mxu0 %v782
    %v856 = vpop.f32.mrb[0].mxu0
    %v857 = vadd.f32 0.0, %v856
    %v858 = vpop.f32.mrb[0].mxu0
    %v859 = vadd.f32 0.0, %v858
    %860 = vdwg.mxu0
    %861 = vmatprep.subr.mxu0 %v375
    %862 = vmatpush1.msra.mxu0 %v374
    %863 = vmatprep.subr.mxu0 %v379
    %864 = vmatpush1.msra.mxu0 %v378
    %865 = vmatprep.subr.mxu0 %v383
    %866 = vmatpush1.msra.mxu0 %v382
    %867 = vmatprep.subr.mxu0 %v387
    %868 = vmatpush1.msra.mxu0 %v386
    %869 = vmatprep.subr.mxu0 %v391
    %870 = vmatpush1.msra.mxu0 %v390
    %871 = vmatprep.subr.mxu0 %v395
    %872 = vmatpush1.msra.mxu0 %v394
    %873 = vmatprep.subr.mxu0 %v399
    %874 = vmatpush1.msra.mxu0 %v398
    %875 = vmatprep.subr.mxu0 %v403
    %876 = vmatpush1.msra.mxu0 %v402
    %877 = vmatprep.subr.mxu0 %v407
    %878 = vmatpush1.msra.mxu0 %v406
    %879 = vmatprep.subr.mxu0 %v411
    %880 = vmatpush1.msra.mxu0 %v410
    %881 = vmatprep.subr.mxu0 %v415
    %882 = vmatpush1.msra.mxu0 %v414
    %883 = vmatprep.subr.mxu0 %v419
    %884 = vmatpush1.msra.mxu0 %v418
    %885 = vmatprep.subr.mxu0 %v423
    %886 = vmatpush1.msra.mxu0 %v422
    %887 = vmatprep.subr.mxu0 %v427
    %888 = vmatpush1.msra.mxu0 %v426
    %889 = vmatprep.subr.mxu0 %v431
    %890 = vmatpush1.msra.mxu0 %v430
    %891 = vmatprep.subr.mxu0 %v435
    %892 = vmatpush1.msra.mxu0 %v434
    %893 = vmatprep.subr.mxu0 0.0
    %894 = vmatpush1.msra.mxu0 0.0
    %895 = vmatprep.subr.mxu0 0.0
    %896 = vmatpush1.msra.mxu0 0.0
    %897 = vmatprep.subr.mxu0 0.0
    %898 = vmatpush1.msra.mxu0 0.0
    %899 = vmatprep.subr.mxu0 0.0
    %900 = vmatpush1.msra.mxu0 0.0
    %901 = vmatprep.subr.mxu0 0.0
    %902 = vmatpush1.msra.mxu0 0.0
    %903 = vmatprep.subr.mxu0 0.0
    %904 = vmatpush1.msra.mxu0 0.0
    %905 = vmatprep.subr.mxu0 0.0
    %906 = vmatpush1.msra.mxu0 0.0
    %907 = vmatprep.subr.mxu0 0.0
    %908 = vmatpush1.msra.mxu0 0.0
    %909 = vmatprep.subr.mxu0 0.0
    %910 = vmatpush1.msra.mxu0 0.0
    %911 = vmatprep.subr.mxu0 0.0
    %912 = vmatpush1.msra.mxu0 0.0
    %913 = vmatprep.subr.mxu0 0.0
    %914 = vmatpush1.msra.mxu0 0.0
    %915 = vmatprep.subr.mxu0 0.0
    %916 = vmatpush1.msra.mxu0 0.0
    %917 = vmatprep.subr.mxu0 0.0
    %918 = vmatpush1.msra.mxu0 0.0
    %919 = vmatprep.subr.mxu0 0.0
    %920 = vmatpush1.msra.mxu0 0.0
    %921 = vmatprep.subr.mxu0 0.0
    %922 = vmatpush1.msra.mxu0 0.0
    %923 = vmatprep.subr.mxu0 0.0
    %924 = vmatpush1.msra.mxu0 0.0
    %925 = vmatprep.mubr.f32.mxu0 0.0
    %926 = vmatmul.mubr.f32.gmra.mrb[0].mxu0 %v782
    %v927 = vpop.f32.mrb[0].mxu0
    %v928 = vadd.f32 0.0, %v927
    %v929 = vpop.f32.mrb[0].mxu0
    %v930 = vadd.f32 0.0, %v929
    %931 = vdwg.mxu0
    %v932 = vadd.f32 %v786, %v857
    %v933 = vadd.f32 %v787, %v859
    %v934 = vadd.f32 %v788, %v928
    %v935 = vadd.f32 %v789, %v930
    %v936 = vxor.u32 %v932, 2147483648
    %v937 = vxor.u32 %v933, 2147483648
    %v938 = vxor.u32 %v934, 2147483648
    %v939 = vmul.f32 %v936, 1.442695
    %v940 = vpow.pop %v939
    %v941 = vmul.f32 %v937, 1.442695
    %v942 = vpow.pop %v941
    %v943 = vmul.f32 %v938, 1.442695
    %v944 = vpow.pop %v943
    %v945 = vadd.f32 %v940, 1.0
    %v946 = vadd.f32 %v942, 1.0
    %v947 = vadd.f32 %v944, 1.0
    %v948 = vrcp.pop %v945
    %v949 = vmul.f32 1.0, %v948
    %v950 = vrcp.pop %v946
    %v951 = vmul.f32 1.0, %v950
    %v952 = vrcp.pop %v947
    %v953 = vmul.f32 1.0, %v952
    %v954 = vtanh.pop %v935
    %v955 = vmul.f32 %v951, %v780
    %v956 = vmul.f32 %v949, %v954
    %v957 = vadd.f32 %v955, %v956
    %v958 = vtanh.pop %v957
    %v959 = vmul.f32 %v953, %v958
    %s960 = smul.u32 3, 4
    %s961 = smul.addr %s960, 8
    %s962 = scalar_lea.vmem [#allocation2], %s961
    %v963 = vld [vmem:[%s962] sm:$0xff]
    %v964 = vld [vmem:[%s962 + $0x8] sm:$0xff]
    %v965 = vld [vmem:[%s962 + $0x10] sm:$0xff]
    %v966 = vld [vmem:[%s962 + $0x18] sm:$0xff]
    %967 = vmatprep.subr.mxu0 %v373
    %968 = vmatpush1.msra.mxu0 %v372
    %969 = vmatprep.subr.mxu0 %v377
    %970 = vmatpush1.msra.mxu0 %v376
    %971 = vmatprep.subr.mxu0 %v381
    %972 = vmatpush1.msra.mxu0 %v380
    %973 = vmatprep.subr.mxu0 %v385
    %974 = vmatpush1.msra.mxu0 %v384
    %975 = vmatprep.subr.mxu0 %v389
    %976 = vmatpush1.msra.mxu0 %v388
    %977 = vmatprep.subr.mxu0 %v393
    %978 = vmatpush1.msra.mxu0 %v392
    %979 = vmatprep.subr.mxu0 %v397
    %980 = vmatpush1.msra.mxu0 %v396
    %981 = vmatprep.subr.mxu0 %v401
    %982 = vmatpush1.msra.mxu0 %v400
    %983 = vmatprep.subr.mxu0 %v405
    %984 = vmatpush1.msra.mxu0 %v404
    %985 = vmatprep.subr.mxu0 %v409
    %986 = vmatpush1.msra.mxu0 %v408
    %987 = vmatprep.subr.mxu0 %v413
    %988 = vmatpush1.msra.mxu0 %v412
    %989 = vmatprep.subr.mxu0 %v417
    %990 = vmatpush1.msra.mxu0 %v416
    %991 = vmatprep.subr.mxu0 %v421
    %992 = vmatpush1.msra.mxu0 %v420
    %993 = vmatprep.subr.mxu0 %v425
    %994 = vmatpush1.msra.mxu0 %v424
    %995 = vmatprep.subr.mxu0 %v429
    %996 = vmatpush1.msra.mxu0 %v428
    %997 = vmatprep.subr.mxu0 %v433
    %998 = vmatpush1.msra.mxu0 %v432
    %999 = vmatprep.subr.mxu0 0.0
    %1000 = vmatpush1.msra.mxu0 0.0
    %1001 = vmatprep.subr.mxu0 0.0
    %1002 = vmatpush1.msra.mxu0 0.0
    %1003 = vmatprep.subr.mxu0 0.0
    %1004 = vmatpush1.msra.mxu0 0.0
    %1005 = vmatprep.subr.mxu0 0.0
    %1006 = vmatpush1.msra.mxu0 0.0
    %1007 = vmatprep.subr.mxu0 0.0
    %1008 = vmatpush1.msra.mxu0 0.0
    %1009 = vmatprep.subr.mxu0 0.0
    %1010 = vmatpush1.msra.mxu0 0.0
    %1011 = vmatprep.subr.mxu0 0.0
    %1012 = vmatpush1.msra.mxu0 0.0
    %1013 = vmatprep.subr.mxu0 0.0
    %1014 = vmatpush1.msra.mxu0 0.0
    %1015 = vmatprep.subr.mxu0 0.0
    %1016 = vmatpush1.msra.mxu0 0.0
    %1017 = vmatprep.subr.mxu0 0.0
    %1018 = vmatpush1.msra.mxu0 0.0
    %1019 = vmatprep.subr.mxu0 0.0
    %1020 = vmatpush1.msra.mxu0 0.0
    %1021 = vmatprep.subr.mxu0 0.0
    %1022 = vmatpush1.msra.mxu0 0.0
    %1023 = vmatprep.subr.mxu0 0.0
    %1024 = vmatpush1.msra.mxu0 0.0
    %1025 = vmatprep.subr.mxu0 0.0
    %1026 = vmatpush1.msra.mxu0 0.0
    %1027 = vmatprep.subr.mxu0 0.0
    %1028 = vmatpush1.msra.mxu0 0.0
    %1029 = vmatprep.subr.mxu0 0.0
    %1030 = vmatpush1.msra.mxu0 0.0
    %1031 = vmatprep.mubr.f32.mxu0 0.0
    %1032 = vmatmul.mubr.f32.gmra.mrb[0].mxu0 %v959
    %v1033 = vpop.f32.mrb[0].mxu0
    %v1034 = vadd.f32 0.0, %v1033
    %v1035 = vpop.f32.mrb[0].mxu0
    %v1036 = vadd.f32 0.0, %v1035
    %1037 = vdwg.mxu0
    %1038 = vmatprep.subr.mxu0 %v375
    %1039 = vmatpush1.msra.mxu0 %v374
    %1040 = vmatprep.subr.mxu0 %v379
    %1041 = vmatpush1.msra.mxu0 %v378
    %1042 = vmatprep.subr.mxu0 %v383
    %1043 = vmatpush1.msra.mxu0 %v382
    %1044 = vmatprep.subr.mxu0 %v387
    %1045 = vmatpush1.msra.mxu0 %v386
    %1046 = vmatprep.subr.mxu0 %v391
    %1047 = vmatpush1.msra.mxu0 %v390
    %1048 = vmatprep.subr.mxu0 %v395
    %1049 = vmatpush1.msra.mxu0 %v394
    %1050 = vmatprep.subr.mxu0 %v399
    %1051 = vmatpush1.msra.mxu0 %v398
    %1052 = vmatprep.subr.mxu0 %v403
    %1053 = vmatpush1.msra.mxu0 %v402
    %1054 = vmatprep.subr.mxu0 %v407
    %1055 = vmatpush1.msra.mxu0 %v406
    %1056 = vmatprep.subr.mxu0 %v411
    %1057 = vmatpush1.msra.mxu0 %v410
    %1058 = vmatprep.subr.mxu0 %v415
    %1059 = vmatpush1.msra.mxu0 %v414
    %1060 = vmatprep.subr.mxu0 %v419
    %1061 = vmatpush1.msra.mxu0 %v418
    %1062 = vmatprep.subr.mxu0 %v423
    %1063 = vmatpush1.msra.mxu0 %v422
    %1064 = vmatprep.subr.mxu0 %v427
    %1065 = vmatpush1.msra.mxu0 %v426
    %1066 = vmatprep.subr.mxu0 %v431
    %1067 = vmatpush1.msra.mxu0 %v430
    %1068 = vmatprep.subr.mxu0 %v435
    %1069 = vmatpush1.msra.mxu0 %v434
    %1070 = vmatprep.subr.mxu0 0.0
    %1071 = vmatpush1.msra.mxu0 0.0
    %1072 = vmatprep.subr.mxu0 0.0
    %1073 = vmatpush1.msra.mxu0 0.0
    %1074 = vmatprep.subr.mxu0 0.0
    %1075 = vmatpush1.msra.mxu0 0.0
    %1076 = vmatprep.subr.mxu0 0.0
    %1077 = vmatpush1.msra.mxu0 0.0
    %1078 = vmatprep.subr.mxu0 0.0
    %1079 = vmatpush1.msra.mxu0 0.0
    %1080 = vmatprep.subr.mxu0 0.0
    %1081 = vmatpush1.msra.mxu0 0.0
    %1082 = vmatprep.subr.mxu0 0.0
    %1083 = vmatpush1.msra.mxu0 0.0
    %1084 = vmatprep.subr.mxu0 0.0
    %1085 = vmatpush1.msra.mxu0 0.0
    %1086 = vmatprep.subr.mxu0 0.0
    %1087 = vmatpush1.msra.mxu0 0.0
    %1088 = vmatprep.subr.mxu0 0.0
    %1089 = vmatpush1.msra.mxu0 0.0
    %1090 = vmatprep.subr.mxu0 0.0
    %1091 = vmatpush1.msra.mxu0 0.0
    %1092 = vmatprep.subr.mxu0 0.0
    %1093 = vmatpush1.msra.mxu0 0.0
    %1094 = vmatprep.subr.mxu0 0.0
    %1095 = vmatpush1.msra.mxu0 0.0
    %1096 = vmatprep.subr.mxu0 0.0
    %1097 = vmatpush1.msra.mxu0 0.0
    %1098 = vmatprep.subr.mxu0 0.0
    %1099 = vmatpush1.msra.mxu0 0.0
    %1100 = vmatprep.subr.mxu0 0.0
    %1101 = vmatpush1.msra.mxu0 0.0
    %1102 = vmatprep.mubr.f32.mxu0 0.0
    %1103 = vmatmul.mubr.f32.gmra.mrb[0].mxu0 %v959
    %v1104 = vpop.f32.mrb[0].mxu0
    %v1105 = vadd.f32 0.0, %v1104
    %v1106 = vpop.f32.mrb[0].mxu0
    %v1107 = vadd.f32 0.0, %v1106
    %1108 = vdwg.mxu0
    %v1109 = vadd.f32 %v963, %v1034
    %v1110 = vadd.f32 %v964, %v1036
    %v1111 = vadd.f32 %v965, %v1105
    %v1112 = vadd.f32 %v966, %v1107
    %v1113 = vxor.u32 %v1109, 2147483648
    %v1114 = vxor.u32 %v1110, 2147483648
    %v1115 = vxor.u32 %v1111, 2147483648
    %v1116 = vmul.f32 %v1113, 1.442695
    %v1117 = vpow.pop %v1116
    %v1118 = vmul.f32 %v1114, 1.442695
    %v1119 = vpow.pop %v1118
    %v1120 = vmul.f32 %v1115, 1.442695
    %v1121 = vpow.pop %v1120
    %v1122 = vadd.f32 %v1117, 1.0
    %v1123 = vadd.f32 %v1119, 1.0
    %v1124 = vadd.f32 %v1121, 1.0
    %v1125 = vrcp.pop %v1122
    %v1126 = vmul.f32 1.0, %v1125
    %v1127 = vrcp.pop %v1123
    %v1128 = vmul.f32 1.0, %v1127
    %v1129 = vrcp.pop %v1124
    %v1130 = vmul.f32 1.0, %v1129
    %v1131 = vtanh.pop %v1112
    %v1132 = vmul.f32 %v1128, %v957
    %v1133 = vmul.f32 %v1126, %v1131
    %v1134 = vadd.f32 %v1132, %v1133
    %v1135 = vtanh.pop %v1134
    %v1136 = vmul.f32 %v1130, %v1135
    %s1137 = smul.u32 4, 4
    %s1138 = smul.addr %s1137, 8
    %s1139 = scalar_lea.vmem [#allocation2], %s1138
    %v1140 = vld [vmem:[%s1139] sm:$0xff]
    %v1141 = vld [vmem:[%s1139 + $0x8] sm:$0xff]
    %v1142 = vld [vmem:[%s1139 + $0x10] sm:$0xff]
    %v1143 = vld [vmem:[%s1139 + $0x18] sm:$0xff]
    %1144 = vmatprep.subr.mxu0 %v373
    %1145 = vmatpush1.msra.mxu0 %v372
    %1146 = vmatprep.subr.mxu0 %v377
    %1147 = vmatpush1.msra.mxu0 %v376
    %1148 = vmatprep.subr.mxu0 %v381
    %1149 = vmatpush1.msra.mxu0 %v380
    %1150 = vmatprep.subr.mxu0 %v385
    %1151 = vmatpush1.msra.mxu0 %v384
    %1152 = vmatprep.subr.mxu0 %v389
    %1153 = vmatpush1.msra.mxu0 %v388
    %1154 = vmatprep.subr.mxu0 %v393
    %1155 = vmatpush1.msra.mxu0 %v392
    %1156 = vmatprep.subr.mxu0 %v397
    %1157 = vmatpush1.msra.mxu0 %v396
    %1158 = vmatprep.subr.mxu0 %v401
    %1159 = vmatpush1.msra.mxu0 %v400
    %1160 = vmatprep.subr.mxu0 %v405
    %1161 = vmatpush1.msra.mxu0 %v404
    %1162 = vmatprep.subr.mxu0 %v409
    %1163 = vmatpush1.msra.mxu0 %v408
    %1164 = vmatprep.subr.mxu0 %v413
    %1165 = vmatpush1.msra.mxu0 %v412
    %1166 = vmatprep.subr.mxu0 %v417
    %1167 = vmatpush1.msra.mxu0 %v416
    %1168 = vmatprep.subr.mxu0 %v421
    %1169 = vmatpush1.msra.mxu0 %v420
    %1170 = vmatprep.subr.mxu0 %v425
    %1171 = vmatpush1.msra.mxu0 %v424
    %1172 = vmatprep.subr.mxu0 %v429
    %1173 = vmatpush1.msra.mxu0 %v428
    %1174 = vmatprep.subr.mxu0 %v433
    %1175 = vmatpush1.msra.mxu0 %v432
    %1176 = vmatprep.subr.mxu0 0.0
    %1177 = vmatpush1.msra.mxu0 0.0
    %1178 = vmatprep.subr.mxu0 0.0
    %1179 = vmatpush1.msra.mxu0 0.0
    %1180 = vmatprep.subr.mxu0 0.0
    %1181 = vmatpush1.msra.mxu0 0.0
    %1182 = vmatprep.subr.mxu0 0.0
    %1183 = vmatpush1.msra.mxu0 0.0
    %1184 = vmatprep.subr.mxu0 0.0
    %1185 = vmatpush1.msra.mxu0 0.0
    %1186 = vmatprep.subr.mxu0 0.0
    %1187 = vmatpush1.msra.mxu0 0.0
    %1188 = vmatprep.subr.mxu0 0.0
    %1189 = vmatpush1.msra.mxu0 0.0
    %1190 = vmatprep.subr.mxu0 0.0
    %1191 = vmatpush1.msra.mxu0 0.0
    %1192 = vmatprep.subr.mxu0 0.0
    %1193 = vmatpush1.msra.mxu0 0.0
    %1194 = vmatprep.subr.mxu0 0.0
    %1195 = vmatpush1.msra.mxu0 0.0
    %1196 = vmatprep.subr.mxu0 0.0
    %1197 = vmatpush1.msra.mxu0 0.0
    %1198 = vmatprep.subr.mxu0 0.0
    %1199 = vmatpush1.msra.mxu0 0.0
    %1200 = vmatprep.subr.mxu0 0.0
    %1201 = vmatpush1.msra.mxu0 0.0
    %1202 = vmatprep.subr.mxu0 0.0
    %1203 = vmatpush1.msra.mxu0 0.0
    %1204 = vmatprep.subr.mxu0 0.0
    %1205 = vmatpush1.msra.mxu0 0.0
    %1206 = vmatprep.subr.mxu0 0.0
    %1207 = vmatpush1.msra.mxu0 0.0
    %1208 = vmatprep.mubr.f32.mxu0 0.0
    %1209 = vmatmul.mubr.f32.gmra.mrb[0].mxu0 %v1136
    %v1210 = vpop.f32.mrb[0].mxu0
    %v1211 = vadd.f32 0.0, %v1210
    %v1212 = vpop.f32.mrb[0].mxu0
    %v1213 = vadd.f32 0.0, %v1212
    %1214 = vdwg.mxu0
    %1215 = vmatprep.subr.mxu0 %v375
    %1216 = vmatpush1.msra.mxu0 %v374
    %1217 = vmatprep.subr.mxu0 %v379
    %1218 = vmatpush1.msra.mxu0 %v378
    %1219 = vmatprep.subr.mxu0 %v383
    %1220 = vmatpush1.msra.mxu0 %v382
    %1221 = vmatprep.subr.mxu0 %v387
    %1222 = vmatpush1.msra.mxu0 %v386
    %1223 = vmatprep.subr.mxu0 %v391
    %1224 = vmatpush1.msra.mxu0 %v390
    %1225 = vmatprep.subr.mxu0 %v395
    %1226 = vmatpush1.msra.mxu0 %v394
    %1227 = vmatprep.subr.mxu0 %v399
    %1228 = vmatpush1.msra.mxu0 %v398
    %1229 = vmatprep.subr.mxu0 %v403
    %1230 = vmatpush1.msra.mxu0 %v402
    %1231 = vmatprep.subr.mxu0 %v407
    %1232 = vmatpush1.msra.mxu0 %v406
    %1233 = vmatprep.subr.mxu0 %v411
    %1234 = vmatpush1.msra.mxu0 %v410
    %1235 = vmatprep.subr.mxu0 %v415
    %1236 = vmatpush1.msra.mxu0 %v414
    %1237 = vmatprep.subr.mxu0 %v419
    %1238 = vmatpush1.msra.mxu0 %v418
    %1239 = vmatprep.subr.mxu0 %v423
    %1240 = vmatpush1.msra.mxu0 %v422
    %1241 = vmatprep.subr.mxu0 %v427
    %1242 = vmatpush1.msra.mxu0 %v426
    %1243 = vmatprep.subr.mxu0 %v431
    %1244 = vmatpush1.msra.mxu0 %v430
    %1245 = vmatprep.subr.mxu0 %v435
    %1246 = vmatpush1.msra.mxu0 %v434
    %1247 = vmatprep.subr.mxu0 0.0
    %1248 = vmatpush1.msra.mxu0 0.0
    %1249 = vmatprep.subr.mxu0 0.0
    %1250 = vmatpush1.msra.mxu0 0.0
    %1251 = vmatprep.subr.mxu0 0.0
    %1252 = vmatpush1.msra.mxu0 0.0
    %1253 = vmatprep.subr.mxu0 0.0
    %1254 = vmatpush1.msra.mxu0 0.0
    %1255 = vmatprep.subr.mxu0 0.0
    %1256 = vmatpush1.msra.mxu0 0.0
    %1257 = vmatprep.subr.mxu0 0.0
    %1258 = vmatpush1.msra.mxu0 0.0
    %1259 = vmatprep.subr.mxu0 0.0
    %1260 = vmatpush1.msra.mxu0 0.0
    %1261 = vmatprep.subr.mxu0 0.0
    %1262 = vmatpush1.msra.mxu0 0.0
    %1263 = vmatprep.subr.mxu0 0.0
    %1264 = vmatpush1.msra.mxu0 0.0
    %1265 = vmatprep.subr.mxu0 0.0
    %1266 = vmatpush1.msra.mxu0 0.0
    %1267 = vmatprep.subr.mxu0 0.0
    %1268 = vmatpush1.msra.mxu0 0.0
    %1269 = vmatprep.subr.mxu0 0.0
    %1270 = vmatpush1.msra.mxu0 0.0
    %1271 = vmatprep.subr.mxu0 0.0
    %1272 = vmatpush1.msra.mxu0 0.0
    %1273 = vmatprep.subr.mxu0 0.0
    %1274 = vmatpush1.msra.mxu0 0.0
    %1275 = vmatprep.subr.mxu0 0.0
    %1276 = vmatpush1.msra.mxu0 0.0
    %1277 = vmatprep.subr.mxu0 0.0
    %1278 = vmatpush1.msra.mxu0 0.0
    %1279 = vmatprep.mubr.f32.mxu0 0.0
    %1280 = vmatmul.mubr.f32.gmra.mrb[0].mxu0 %v1136
    %v1281 = vpop.f32.mrb[0].mxu0
    %v1282 = vadd.f32 0.0, %v1281
    %v1283 = vpop.f32.mrb[0].mxu0
    %v1284 = vadd.f32 0.0, %v1283
    %1285 = vdwg.mxu0
    %v1286 = vadd.f32 %v1140, %v1211
    %v1287 = vadd.f32 %v1141, %v1213
    %v1288 = vadd.f32 %v1142, %v1282
    %v1289 = vadd.f32 %v1143, %v1284
    %v1290 = vxor.u32 %v1286, 2147483648
    %v1291 = vxor.u32 %v1287, 2147483648
    %v1292 = vxor.u32 %v1288, 2147483648
    %v1293 = vmul.f32 %v1290, 1.442695
    %v1294 = vpow.pop %v1293
    %v1295 = vmul.f32 %v1291, 1.442695
    %v1296 = vpow.pop %v1295
    %v1297 = vmul.f32 %v1292, 1.442695
    %v1298 = vpow.pop %v1297
    %v1299 = vadd.f32 %v1294, 1.0
    %v1300 = vadd.f32 %v1296, 1.0
    %v1301 = vadd.f32 %v1298, 1.0
    %v1302 = vrcp.pop %v1299
    %v1303 = vmul.f32 1.0, %v1302
    %v1304 = vrcp.pop %v1300
    %v1305 = vmul.f32 1.0, %v1304
    %v1306 = vrcp.pop %v1301
    %v1307 = vmul.f32 1.0, %v1306
    %v1308 = vtanh.pop %v1289
    %v1309 = vmul.f32 %v1305, %v1134
    %v1310 = vmul.f32 %v1303, %v1308
    %v1311 = vadd.f32 %v1309, %v1310
    %v1312 = vtanh.pop %v1311
    %v1313 = vmul.f32 %v1307, %v1312
    %s1314 = smul.u32 5, 4
    %s1315 = smul.addr %s1314, 8
    %s1316 = scalar_lea.vmem [#allocation2], %s1315
    %v1317 = vld [vmem:[%s1316] sm:$0xff]
    %v1318 = vld [vmem:[%s1316 + $0x8] sm:$0xff]
    %v1319 = vld [vmem:[%s1316 + $0x10] sm:$0xff]
    %v1320 = vld [vmem:[%s1316 + $0x18] sm:$0xff]
    %1321 = vmatprep.subr.mxu0 %v373
    %1322 = vmatpush1.msra.mxu0 %v372
    %1323 = vmatprep.subr.mxu0 %v377
    %1324 = vmatpush1.msra.mxu0 %v376
    %1325 = vmatprep.subr.mxu0 %v381
    %1326 = vmatpush1.msra.mxu0 %v380
    %1327 = vmatprep.subr.mxu0 %v385
    %1328 = vmatpush1.msra.mxu0 %v384
    %1329 = vmatprep.subr.mxu0 %v389
    %1330 = vmatpush1.msra.mxu0 %v388
    %1331 = vmatprep.subr.mxu0 %v393
    %1332 = vmatpush1.msra.mxu0 %v392
    %1333 = vmatprep.subr.mxu0 %v397
    %1334 = vmatpush1.msra.mxu0 %v396
    %1335 = vmatprep.subr.mxu0 %v401
    %1336 = vmatpush1.msra.mxu0 %v400
    %1337 = vmatprep.subr.mxu0 %v405
    %1338 = vmatpush1.msra.mxu0 %v404
    %1339 = vmatprep.subr.mxu0 %v409
    %1340 = vmatpush1.msra.mxu0 %v408
    %1341 = vmatprep.subr.mxu0 %v413
    %1342 = vmatpush1.msra.mxu0 %v412
    %1343 = vmatprep.subr.mxu0 %v417
    %1344 = vmatpush1.msra.mxu0 %v416
    %1345 = vmatprep.subr.mxu0 %v421
    %1346 = vmatpush1.msra.mxu0 %v420
    %1347 = vmatprep.subr.mxu0 %v425
    %1348 = vmatpush1.msra.mxu0 %v424
    %1349 = vmatprep.subr.mxu0 %v429
    %1350 = vmatpush1.msra.mxu0 %v428
    %1351 = vmatprep.subr.mxu0 %v433
    %1352 = vmatpush1.msra.mxu0 %v432
    %1353 = vmatprep.subr.mxu0 0.0
    %1354 = vmatpush1.msra.mxu0 0.0
    %1355 = vmatprep.subr.mxu0 0.0
    %1356 = vmatpush1.msra.mxu0 0.0
    %1357 = vmatprep.subr.mxu0 0.0
    %1358 = vmatpush1.msra.mxu0 0.0
    %1359 = vmatprep.subr.mxu0 0.0
    %1360 = vmatpush1.msra.mxu0 0.0
    %1361 = vmatprep.subr.mxu0 0.0
    %1362 = vmatpush1.msra.mxu0 0.0
    %1363 = vmatprep.subr.mxu0 0.0
    %1364 = vmatpush1.msra.mxu0 0.0
    %1365 = vmatprep.subr.mxu0 0.0
    %1366 = vmatpush1.msra.mxu0 0.0
    %1367 = vmatprep.subr.mxu0 0.0
    %1368 = vmatpush1.msra.mxu0 0.0
    %1369 = vmatprep.subr.mxu0 0.0
    %1370 = vmatpush1.msra.mxu0 0.0
    %1371 = vmatprep.subr.mxu0 0.0
    %1372 = vmatpush1.msra.mxu0 0.0
    %1373 = vmatprep.subr.mxu0 0.0
    %1374 = vmatpush1.msra.mxu0 0.0
    %1375 = vmatprep.subr.mxu0 0.0
    %1376 = vmatpush1.msra.mxu0 0.0
    %1377 = vmatprep.subr.mxu0 0.0
    %1378 = vmatpush1.msra.mxu0 0.0
    %1379 = vmatprep.subr.mxu0 0.0
    %1380 = vmatpush1.msra.mxu0 0.0
    %1381 = vmatprep.subr.mxu0 0.0
    %1382 = vmatpush1.msra.mxu0 0.0
    %1383 = vmatprep.subr.mxu0 0.0
    %1384 = vmatpush1.msra.mxu0 0.0
    %1385 = vmatprep.mubr.f32.mxu0 0.0
    %1386 = vmatmul.mubr.f32.gmra.mrb[0].mxu0 %v1313
    %v1387 = vpop.f32.mrb[0].mxu0
    %v1388 = vadd.f32 0.0, %v1387
    %v1389 = vpop.f32.mrb[0].mxu0
    %v1390 = vadd.f32 0.0, %v1389
    %1391 = vdwg.mxu0
    %1392 = vmatprep.subr.mxu0 %v375
    %1393 = vmatpush1.msra.mxu0 %v374
    %1394 = vmatprep.subr.mxu0 %v379
    %1395 = vmatpush1.msra.mxu0 %v378
    %1396 = vmatprep.subr.mxu0 %v383
    %1397 = vmatpush1.msra.mxu0 %v382
    %1398 = vmatprep.subr.mxu0 %v387
    %1399 = vmatpush1.msra.mxu0 %v386
    %1400 = vmatprep.subr.mxu0 %v391
    %1401 = vmatpush1.msra.mxu0 %v390
    %1402 = vmatprep.subr.mxu0 %v395
    %1403 = vmatpush1.msra.mxu0 %v394
    %1404 = vmatprep.subr.mxu0 %v399
    %1405 = vmatpush1.msra.mxu0 %v398
    %1406 = vmatprep.subr.mxu0 %v403
    %1407 = vmatpush1.msra.mxu0 %v402
    %1408 = vmatprep.subr.mxu0 %v407
    %1409 = vmatpush1.msra.mxu0 %v406
    %1410 = vmatprep.subr.mxu0 %v411
    %1411 = vmatpush1.msra.mxu0 %v410
    %1412 = vmatprep.subr.mxu0 %v415
    %1413 = vmatpush1.msra.mxu0 %v414
    %1414 = vmatprep.subr.mxu0 %v419
    %1415 = vmatpush1.msra.mxu0 %v418
    %1416 = vmatprep.subr.mxu0 %v423
    %1417 = vmatpush1.msra.mxu0 %v422
    %1418 = vmatprep.subr.mxu0 %v427
    %1419 = vmatpush1.msra.mxu0 %v426
    %1420 = vmatprep.subr.mxu0 %v431
    %1421 = vmatpush1.msra.mxu0 %v430
    %1422 = vmatprep.subr.mxu0 %v435
    %1423 = vmatpush1.msra.mxu0 %v434
    %1424 = vmatprep.subr.mxu0 0.0
    %1425 = vmatpush1.msra.mxu0 0.0
    %1426 = vmatprep.subr.mxu0 0.0
    %1427 = vmatpush1.msra.mxu0 0.0
    %1428 = vmatprep.subr.mxu0 0.0
    %1429 = vmatpush1.msra.mxu0 0.0
    %1430 = vmatprep.subr.mxu0 0.0
    %1431 = vmatpush1.msra.mxu0 0.0
    %1432 = vmatprep.subr.mxu0 0.0
    %1433 = vmatpush1.msra.mxu0 0.0
    %1434 = vmatprep.subr.mxu0 0.0
    %1435 = vmatpush1.msra.mxu0 0.0
    %1436 = vmatprep.subr.mxu0 0.0
    %1437 = vmatpush1.msra.mxu0 0.0
    %1438 = vmatprep.subr.mxu0 0.0
    %1439 = vmatpush1.msra.mxu0 0.0
    %1440 = vmatprep.subr.mxu0 0.0
    %1441 = vmatpush1.msra.mxu0 0.0
    %1442 = vmatprep.subr.mxu0 0.0
    %1443 = vmatpush1.msra.mxu0 0.0
    %1444 = vmatprep.subr.mxu0 0.0
    %1445 = vmatpush1.msra.mxu0 0.0
    %1446 = vmatprep.subr.mxu0 0.0
    %1447 = vmatpush1.msra.mxu0 0.0
    %1448 = vmatprep.subr.mxu0 0.0
    %1449 = vmatpush1.msra.mxu0 0.0
    %1450 = vmatprep.subr.mxu0 0.0
    %1451 = vmatpush1.msra.mxu0 0.0
    %1452 = vmatprep.subr.mxu0 0.0
    %1453 = vmatpush1.msra.mxu0 0.0
    %1454 = vmatprep.subr.mxu0 0.0
    %1455 = vmatpush1.msra.mxu0 0.0
    %1456 = vmatprep.mubr.f32.mxu0 0.0
    %1457 = vmatmul.mubr.f32.gmra.mrb[0].mxu0 %v1313
    %v1458 = vpop.f32.mrb[0].mxu0
    %v1459 = vadd.f32 0.0, %v1458
    %v1460 = vpop.f32.mrb[0].mxu0
    %v1461 = vadd.f32 0.0, %v1460
    %1462 = vdwg.mxu0
    %v1463 = vadd.f32 %v1317, %v1388
    %v1464 = vadd.f32 %v1318, %v1390
    %v1465 = vadd.f32 %v1319, %v1459
    %v1466 = vadd.f32 %v1320, %v1461
    %v1467 = vxor.u32 %v1463, 2147483648
    %v1468 = vxor.u32 %v1464, 2147483648
    %v1469 = vxor.u32 %v1465, 2147483648
    %v1470 = vmul.f32 %v1467, 1.442695
    %v1471 = vpow.pop %v1470
    %v1472 = vmul.f32 %v1468, 1.442695
    %v1473 = vpow.pop %v1472
    %v1474 = vmul.f32 %v1469, 1.442695
    %v1475 = vpow.pop %v1474
    %v1476 = vadd.f32 %v1471, 1.0
    %v1477 = vadd.f32 %v1473, 1.0
    %v1478 = vadd.f32 %v1475, 1.0
    %v1479 = vrcp.pop %v1476
    %v1480 = vmul.f32 1.0, %v1479
    %v1481 = vrcp.pop %v1477
    %v1482 = vmul.f32 1.0, %v1481
    %v1483 = vrcp.pop %v1478
    %v1484 = vmul.f32 1.0, %v1483
    %v1485 = vtanh.pop %v1466
    %v1486 = vmul.f32 %v1482, %v1311
    %v1487 = vmul.f32 %v1480, %v1485
    %v1488 = vadd.f32 %v1486, %v1487
    %v1489 = vtanh.pop %v1488
    %v1490 = vmul.f32 %v1484, %v1489
    %s1491 = smul.u32 6, 4
    %s1492 = smul.addr %s1491, 8
    %s1493 = scalar_lea.vmem [#allocation2], %s1492
    %v1494 = vld [vmem:[%s1493] sm:$0xff]
    %v1495 = vld [vmem:[%s1493 + $0x8] sm:$0xff]
    %v1496 = vld [vmem:[%s1493 + $0x10] sm:$0xff]
    %v1497 = vld [vmem:[%s1493 + $0x18] sm:$0xff]
    %1498 = vmatprep.subr.mxu0 %v373
    %1499 = vmatpush1.msra.mxu0 %v372
    %1500 = vmatprep.subr.mxu0 %v377
    %1501 = vmatpush1.msra.mxu0 %v376
    %1502 = vmatprep.subr.mxu0 %v381
    %1503 = vmatpush1.msra.mxu0 %v380
    %1504 = vmatprep.subr.mxu0 %v385
    %1505 = vmatpush1.msra.mxu0 %v384
    %1506 = vmatprep.subr.mxu0 %v389
    %1507 = vmatpush1.msra.mxu0 %v388
    %1508 = vmatprep.subr.mxu0 %v393
    %1509 = vmatpush1.msra.mxu0 %v392
    %1510 = vmatprep.subr.mxu0 %v397
    %1511 = vmatpush1.msra.mxu0 %v396
    %1512 = vmatprep.subr.mxu0 %v401
    %1513 = vmatpush1.msra.mxu0 %v400
    %1514 = vmatprep.subr.mxu0 %v405
    %1515 = vmatpush1.msra.mxu0 %v404
    %1516 = vmatprep.subr.mxu0 %v409
    %1517 = vmatpush1.msra.mxu0 %v408
    %1518 = vmatprep.subr.mxu0 %v413
    %1519 = vmatpush1.msra.mxu0 %v412
    %1520 = vmatprep.subr.mxu0 %v417
    %1521 = vmatpush1.msra.mxu0 %v416
    %1522 = vmatprep.subr.mxu0 %v421
    %1523 = vmatpush1.msra.mxu0 %v420
    %1524 = vmatprep.subr.mxu0 %v425
    %1525 = vmatpush1.msra.mxu0 %v424
    %1526 = vmatprep.subr.mxu0 %v429
    %1527 = vmatpush1.msra.mxu0 %v428
    %1528 = vmatprep.subr.mxu0 %v433
    %1529 = vmatpush1.msra.mxu0 %v432
    %1530 = vmatprep.subr.mxu0 0.0
    %1531 = vmatpush1.msra.mxu0 0.0
    %1532 = vmatprep.subr.mxu0 0.0
    %1533 = vmatpush1.msra.mxu0 0.0
    %1534 = vmatprep.subr.mxu0 0.0
    %1535 = vmatpush1.msra.mxu0 0.0
    %1536 = vmatprep.subr.mxu0 0.0
    %1537 = vmatpush1.msra.mxu0 0.0
    %1538 = vmatprep.subr.mxu0 0.0
    %1539 = vmatpush1.msra.mxu0 0.0
    %1540 = vmatprep.subr.mxu0 0.0
    %1541 = vmatpush1.msra.mxu0 0.0
    %1542 = vmatprep.subr.mxu0 0.0
    %1543 = vmatpush1.msra.mxu0 0.0
    %1544 = vmatprep.subr.mxu0 0.0
    %1545 = vmatpush1.msra.mxu0 0.0
    %1546 = vmatprep.subr.mxu0 0.0
    %1547 = vmatpush1.msra.mxu0 0.0
    %1548 = vmatprep.subr.mxu0 0.0
    %1549 = vmatpush1.msra.mxu0 0.0
    %1550 = vmatprep.subr.mxu0 0.0
    %1551 = vmatpush1.msra.mxu0 0.0
    %1552 = vmatprep.subr.mxu0 0.0
    %1553 = vmatpush1.msra.mxu0 0.0
    %1554 = vmatprep.subr.mxu0 0.0
    %1555 = vmatpush1.msra.mxu0 0.0
    %1556 = vmatprep.subr.mxu0 0.0
    %1557 = vmatpush1.msra.mxu0 0.0
    %1558 = vmatprep.subr.mxu0 0.0
    %1559 = vmatpush1.msra.mxu0 0.0
    %1560 = vmatprep.subr.mxu0 0.0
    %1561 = vmatpush1.msra.mxu0 0.0
    %1562 = vmatprep.mubr.f32.mxu0 0.0
    %1563 = vmatmul.mubr.f32.gmra.mrb[0].mxu0 %v1490
    %v1564 = vpop.f32.mrb[0].mxu0
    %v1565 = vadd.f32 0.0, %v1564
    %v1566 = vpop.f32.mrb[0].mxu0
    %v1567 = vadd.f32 0.0, %v1566
    %1568 = vdwg.mxu0
    %1569 = vmatprep.subr.mxu0 %v375
    %1570 = vmatpush1.msra.mxu0 %v374
    %1571 = vmatprep.subr.mxu0 %v379
    %1572 = vmatpush1.msra.mxu0 %v378
    %1573 = vmatprep.subr.mxu0 %v383
    %1574 = vmatpush1.msra.mxu0 %v382
    %1575 = vmatprep.subr.mxu0 %v387
    %1576 = vmatpush1.msra.mxu0 %v386
    %1577 = vmatprep.subr.mxu0 %v391
    %1578 = vmatpush1.msra.mxu0 %v390
    %1579 = vmatprep.subr.mxu0 %v395
    %1580 = vmatpush1.msra.mxu0 %v394
    %1581 = vmatprep.subr.mxu0 %v399
    %1582 = vmatpush1.msra.mxu0 %v398
    %1583 = vmatprep.subr.mxu0 %v403
    %1584 = vmatpush1.msra.mxu0 %v402
    %1585 = vmatprep.subr.mxu0 %v407
    %1586 = vmatpush1.msra.mxu0 %v406
    %1587 = vmatprep.subr.mxu0 %v411
    %1588 = vmatpush1.msra.mxu0 %v410
    %1589 = vmatprep.subr.mxu0 %v415
    %1590 = vmatpush1.msra.mxu0 %v414
    %1591 = vmatprep.subr.mxu0 %v419
    %1592 = vmatpush1.msra.mxu0 %v418
    %1593 = vmatprep.subr.mxu0 %v423
    %1594 = vmatpush1.msra.mxu0 %v422
    %1595 = vmatprep.subr.mxu0 %v427
    %1596 = vmatpush1.msra.mxu0 %v426
    %1597 = vmatprep.subr.mxu0 %v431
    %1598 = vmatpush1.msra.mxu0 %v430
    %1599 = vmatprep.subr.mxu0 %v435
    %1600 = vmatpush1.msra.mxu0 %v434
    %1601 = vmatprep.subr.mxu0 0.0
    %1602 = vmatpush1.msra.mxu0 0.0
    %1603 = vmatprep.subr.mxu0 0.0
    %1604 = vmatpush1.msra.mxu0 0.0
    %1605 = vmatprep.subr.mxu0 0.0
    %1606 = vmatpush1.msra.mxu0 0.0
    %1607 = vmatprep.subr.mxu0 0.0
    %1608 = vmatpush1.msra.mxu0 0.0
    %1609 = vmatprep.subr.mxu0 0.0
    %1610 = vmatpush1.msra.mxu0 0.0
    %1611 = vmatprep.subr.mxu0 0.0
    %1612 = vmatpush1.msra.mxu0 0.0
    %1613 = vmatprep.subr.mxu0 0.0
    %1614 = vmatpush1.msra.mxu0 0.0
    %1615 = vmatprep.subr.mxu0 0.0
    %1616 = vmatpush1.msra.mxu0 0.0
    %1617 = vmatprep.subr.mxu0 0.0
    %1618 = vmatpush1.msra.mxu0 0.0
    %1619 = vmatprep.subr.mxu0 0.0
    %1620 = vmatpush1.msra.mxu0 0.0
    %1621 = vmatprep.subr.mxu0 0.0
    %1622 = vmatpush1.msra.mxu0 0.0
    %1623 = vmatprep.subr.mxu0 0.0
    %1624 = vmatpush1.msra.mxu0 0.0
    %1625 = vmatprep.subr.mxu0 0.0
    %1626 = vmatpush1.msra.mxu0 0.0
    %1627 = vmatprep.subr.mxu0 0.0
    %1628 = vmatpush1.msra.mxu0 0.0
    %1629 = vmatprep.subr.mxu0 0.0
    %1630 = vmatpush1.msra.mxu0 0.0
    %1631 = vmatprep.subr.mxu0 0.0
    %1632 = vmatpush1.msra.mxu0 0.0
    %1633 = vmatprep.mubr.f32.mxu0 0.0
    %1634 = vmatmul.mubr.f32.gmra.mrb[0].mxu0 %v1490
    %v1635 = vpop.f32.mrb[0].mxu0
    %v1636 = vadd.f32 0.0, %v1635
    %v1637 = vpop.f32.mrb[0].mxu0
    %v1638 = vadd.f32 0.0, %v1637
    %1639 = vdwg.mxu0
    %v1640 = vadd.f32 %v1494, %v1565
    %v1641 = vadd.f32 %v1495, %v1567
    %v1642 = vadd.f32 %v1496, %v1636
    %v1643 = vadd.f32 %v1497, %v1638
    %v1644 = vxor.u32 %v1640, 2147483648
    %v1645 = vxor.u32 %v1641, 2147483648
    %v1646 = vxor.u32 %v1642, 2147483648
    %v1647 = vmul.f32 %v1644, 1.442695
    %v1648 = vpow.pop %v1647
    %v1649 = vmul.f32 %v1645, 1.442695
    %v1650 = vpow.pop %v1649
    %v1651 = vmul.f32 %v1646, 1.442695
    %v1652 = vpow.pop %v1651
    %v1653 = vadd.f32 %v1648, 1.0
    %v1654 = vadd.f32 %v1650, 1.0
    %v1655 = vadd.f32 %v1652, 1.0
    %v1656 = vrcp.pop %v1653
    %v1657 = vmul.f32 1.0, %v1656
    %v1658 = vrcp.pop %v1654
    %v1659 = vmul.f32 1.0, %v1658
    %v1660 = vrcp.pop %v1655
    %v1661 = vmul.f32 1.0, %v1660
    %v1662 = vtanh.pop %v1643
    %v1663 = vmul.f32 %v1659, %v1488
    %v1664 = vmul.f32 %v1657, %v1662
    %v1665 = vadd.f32 %v1663, %v1664
    %v1666 = vtanh.pop %v1665
    %v1667 = vmul.f32 %v1661, %v1666
    %s1668 = smul.u32 7, 4
    %s1669 = smul.addr %s1668, 8
    %s1670 = scalar_lea.vmem [#allocation2], %s1669
    %v1671 = vld [vmem:[%s1670] sm:$0xff]
    %v1672 = vld [vmem:[%s1670 + $0x8] sm:$0xff]
    %v1673 = vld [vmem:[%s1670 + $0x10] sm:$0xff]
    %v1674 = vld [vmem:[%s1670 + $0x18] sm:$0xff]
    %1675 = vmatprep.subr.mxu0 %v373
    %1676 = vmatpush1.msra.mxu0 %v372
    %1677 = vmatprep.subr.mxu0 %v377
    %1678 = vmatpush1.msra.mxu0 %v376
    %1679 = vmatprep.subr.mxu0 %v381
    %1680 = vmatpush1.msra.mxu0 %v380
    %1681 = vmatprep.subr.mxu0 %v385
    %1682 = vmatpush1.msra.mxu0 %v384
    %1683 = vmatprep.subr.mxu0 %v389
    %1684 = vmatpush1.msra.mxu0 %v388
    %1685 = vmatprep.subr.mxu0 %v393
    %1686 = vmatpush1.msra.mxu0 %v392
    %1687 = vmatprep.subr.mxu0 %v397
    %1688 = vmatpush1.msra.mxu0 %v396
    %1689 = vmatprep.subr.mxu0 %v401
    %1690 = vmatpush1.msra.mxu0 %v400
    %1691 = vmatprep.subr.mxu0 %v405
    %1692 = vmatpush1.msra.mxu0 %v404
    %1693 = vmatprep.subr.mxu0 %v409
    %1694 = vmatpush1.msra.mxu0 %v408
    %1695 = vmatprep.subr.mxu0 %v413
    %1696 = vmatpush1.msra.mxu0 %v412
    %1697 = vmatprep.subr.mxu0 %v417
    %1698 = vmatpush1.msra.mxu0 %v416
    %1699 = vmatprep.subr.mxu0 %v421
    %1700 = vmatpush1.msra.mxu0 %v420
    %1701 = vmatprep.subr.mxu0 %v425
    %1702 = vmatpush1.msra.mxu0 %v424
    %1703 = vmatprep.subr.mxu0 %v429
    %1704 = vmatpush1.msra.mxu0 %v428
    %1705 = vmatprep.subr.mxu0 %v433
    %1706 = vmatpush1.msra.mxu0 %v432
    %1707 = vmatprep.subr.mxu0 0.0
    %1708 = vmatpush1.msra.mxu0 0.0
    %1709 = vmatprep.subr.mxu0 0.0
    %1710 = vmatpush1.msra.mxu0 0.0
    %1711 = vmatprep.subr.mxu0 0.0
    %1712 = vmatpush1.msra.mxu0 0.0
    %1713 = vmatprep.subr.mxu0 0.0
    %1714 = vmatpush1.msra.mxu0 0.0
    %1715 = vmatprep.subr.mxu0 0.0
    %1716 = vmatpush1.msra.mxu0 0.0
    %1717 = vmatprep.subr.mxu0 0.0
    %1718 = vmatpush1.msra.mxu0 0.0
    %1719 = vmatprep.subr.mxu0 0.0
    %1720 = vmatpush1.msra.mxu0 0.0
    %1721 = vmatprep.subr.mxu0 0.0
    %1722 = vmatpush1.msra.mxu0 0.0
    %1723 = vmatprep.subr.mxu0 0.0
    %1724 = vmatpush1.msra.mxu0 0.0
    %1725 = vmatprep.subr.mxu0 0.0
    %1726 = vmatpush1.msra.mxu0 0.0
    %1727 = vmatprep.subr.mxu0 0.0
    %1728 = vmatpush1.msra.mxu0 0.0
    %1729 = vmatprep.subr.mxu0 0.0
    %1730 = vmatpush1.msra.mxu0 0.0
    %1731 = vmatprep.subr.mxu0 0.0
    %1732 = vmatpush1.msra.mxu0 0.0
    %1733 = vmatprep.subr.mxu0 0.0
    %1734 = vmatpush1.msra.mxu0 0.0
    %1735 = vmatprep.subr.mxu0 0.0
    %1736 = vmatpush1.msra.mxu0 0.0
    %1737 = vmatprep.subr.mxu0 0.0
    %1738 = vmatpush1.msra.mxu0 0.0
    %1739 = vmatprep.mubr.f32.mxu0 0.0
    %1740 = vmatmul.mubr.f32.gmra.mrb[0].mxu0 %v1667
    %v1741 = vpop.f32.mrb[0].mxu0
    %v1742 = vadd.f32 0.0, %v1741
    %v1743 = vpop.f32.mrb[0].mxu0
    %v1744 = vadd.f32 0.0, %v1743
    %1745 = vdwg.mxu0
    %1746 = vmatprep.subr.mxu0 %v375
    %1747 = vmatpush1.msra.mxu0 %v374
    %1748 = vmatprep.subr.mxu0 %v379
    %1749 = vmatpush1.msra.mxu0 %v378
    %1750 = vmatprep.subr.mxu0 %v383
    %1751 = vmatpush1.msra.mxu0 %v382
    %1752 = vmatprep.subr.mxu0 %v387
    %1753 = vmatpush1.msra.mxu0 %v386
    %1754 = vmatprep.subr.mxu0 %v391
    %1755 = vmatpush1.msra.mxu0 %v390
    %1756 = vmatprep.subr.mxu0 %v395
    %1757 = vmatpush1.msra.mxu0 %v394
    %1758 = vmatprep.subr.mxu0 %v399
    %1759 = vmatpush1.msra.mxu0 %v398
    %1760 = vmatprep.subr.mxu0 %v403
    %1761 = vmatpush1.msra.mxu0 %v402
    %1762 = vmatprep.subr.mxu0 %v407
    %1763 = vmatpush1.msra.mxu0 %v406
    %1764 = vmatprep.subr.mxu0 %v411
    %1765 = vmatpush1.msra.mxu0 %v410
    %1766 = vmatprep.subr.mxu0 %v415
    %1767 = vmatpush1.msra.mxu0 %v414
    %1768 = vmatprep.subr.mxu0 %v419
    %1769 = vmatpush1.msra.mxu0 %v418
    %1770 = vmatprep.subr.mxu0 %v423
    %1771 = vmatpush1.msra.mxu0 %v422
    %1772 = vmatprep.subr.mxu0 %v427
    %1773 = vmatpush1.msra.mxu0 %v426
    %1774 = vmatprep.subr.mxu0 %v431
    %1775 = vmatpush1.msra.mxu0 %v430
    %1776 = vmatprep.subr.mxu0 %v435
    %1777 = vmatpush1.msra.mxu0 %v434
    %1778 = vmatprep.subr.mxu0 0.0
    %1779 = vmatpush1.msra.mxu0 0.0
    %1780 = vmatprep.subr.mxu0 0.0
    %1781 = vmatpush1.msra.mxu0 0.0
    %1782 = vmatprep.subr.mxu0 0.0
    %1783 = vmatpush1.msra.mxu0 0.0
    %1784 = vmatprep.subr.mxu0 0.0
    %1785 = vmatpush1.msra.mxu0 0.0
    %1786 = vmatprep.subr.mxu0 0.0
    %1787 = vmatpush1.msra.mxu0 0.0
    %1788 = vmatprep.subr.mxu0 0.0
    %1789 = vmatpush1.msra.mxu0 0.0
    %1790 = vmatprep.subr.mxu0 0.0
    %1791 = vmatpush1.msra.mxu0 0.0
    %1792 = vmatprep.subr.mxu0 0.0
    %1793 = vmatpush1.msra.mxu0 0.0
    %1794 = vmatprep.subr.mxu0 0.0
    %1795 = vmatpush1.msra.mxu0 0.0
    %1796 = vmatprep.subr.mxu0 0.0
    %1797 = vmatpush1.msra.mxu0 0.0
    %1798 = vmatprep.subr.mxu0 0.0
    %1799 = vmatpush1.msra.mxu0 0.0
    %1800 = vmatprep.subr.mxu0 0.0
    %1801 = vmatpush1.msra.mxu0 0.0
    %1802 = vmatprep.subr.mxu0 0.0
    %1803 = vmatpush1.msra.mxu0 0.0
    %1804 = vmatprep.subr.mxu0 0.0
    %1805 = vmatpush1.msra.mxu0 0.0
    %1806 = vmatprep.subr.mxu0 0.0
    %1807 = vmatpush1.msra.mxu0 0.0
    %1808 = vmatprep.subr.mxu0 0.0
    %1809 = vmatpush1.msra.mxu0 0.0
    %1810 = vmatprep.mubr.f32.mxu0 0.0
    %1811 = vmatmul.mubr.f32.gmra.mrb[0].mxu0 %v1667
    %v1812 = vpop.f32.mrb[0].mxu0
    %v1813 = vadd.f32 0.0, %v1812
    %v1814 = vpop.f32.mrb[0].mxu0
    %v1815 = vadd.f32 0.0, %v1814
    %1816 = vdwg.mxu0
    %v1817 = vadd.f32 %v1671, %v1742
    %v1818 = vadd.f32 %v1672, %v1744
    %v1819 = vadd.f32 %v1673, %v1813
    %v1820 = vadd.f32 %v1674, %v1815
    %v1821 = vxor.u32 %v1817, 2147483648
    %v1822 = vxor.u32 %v1818, 2147483648
    %v1823 = vxor.u32 %v1819, 2147483648
    %v1824 = vmul.f32 %v1821, 1.442695
    %v1825 = vpow.pop %v1824
    %v1826 = vmul.f32 %v1822, 1.442695
    %v1827 = vpow.pop %v1826
    %v1828 = vmul.f32 %v1823, 1.442695
    %v1829 = vpow.pop %v1828
    %v1830 = vadd.f32 %v1825, 1.0
    %v1831 = vadd.f32 %v1827, 1.0
    %v1832 = vadd.f32 %v1829, 1.0
    %v1833 = vrcp.pop %v1830
    %v1834 = vmul.f32 1.0, %v1833
    %v1835 = vrcp.pop %v1831
    %v1836 = vmul.f32 1.0, %v1835
    %v1837 = vrcp.pop %v1832
    %v1838 = vmul.f32 1.0, %v1837
    %v1839 = vtanh.pop %v1820
    %v1840 = vmul.f32 %v1836, %v1665
    %v1841 = vmul.f32 %v1834, %v1839
    %v1842 = vadd.f32 %v1840, %v1841
    %v1843 = vtanh.pop %v1842
    %v1844 = vmul.f32 %v1838, %v1843
    %1845 = vst [vmem:[#allocation3] sm:$0xff] %v1844
    %1846 = vst [vmem:[#allocation5] sm:$0xff] %v1842
    %v1847 = vld [vmem:[%s6] sm:$0xff]
    %v1848 = vld [vmem:[%s6 + $0x8] sm:$0xff]
    %v1849 = vld [vmem:[%s6 + $0x10] sm:$0xff]
    %v1850 = vld [vmem:[%s6 + $0x18] sm:$0xff]
    %v1851 = vld [vmem:[%s6 + $0x20] sm:$0xff]
    %v1852 = vld [vmem:[%s6 + $0x28] sm:$0xff]
    %v1853 = vld [vmem:[%s6 + $0x30] sm:$0xff]
    %v1854 = vld [vmem:[%s6 + $0x38] sm:$0xff]
    %v1855 = vld [vmem:[%s6 + $0x40] sm:$0xff]
    %v1856 = vld [vmem:[%s6 + $0x48] sm:$0xff]
    %v1857 = vld [vmem:[%s6 + $0x50] sm:$0xff]
    %v1858 = vld [vmem:[%s6 + $0x58] sm:$0xff]
    %v1859 = vld [vmem:[%s6 + $0x60] sm:$0xff]
    %v1860 = vld [vmem:[%s6 + $0x68] sm:$0xff]
    %v1861 = vld [vmem:[%s6 + $0x70] sm:$0xff]
    %v1862 = vld [vmem:[%s6 + $0x78] sm:$0xff]
    %v1863 = vld [vmem:[%s7] sm:$0x1]
    %v1865 = vlaneseq
    %v1866 = vshrl.u32 %v1865, 7
    %v1867 = vsub.s32 0, %v1866
    %v1868 = vrot.slane %v1863, %v1867
    %1870 = vmatprep.subr.mxu0 0.0
    %1871 = vmatpush1.msra.mxu0 %v1847
    %1872 = vmatprep.subr.mxu0 0.0
    %1873 = vmatpush1.msra.mxu0 %v1848
    %1874 = vmatprep.subr.mxu0 0.0
    %1875 = vmatpush1.msra.mxu0 %v1849
    %1876 = vmatprep.subr.mxu0 0.0
    %1877 = vmatpush1.msra.mxu0 %v1850
    %1878 = vmatprep.subr.mxu0 0.0
    %1879 = vmatpush1.msra.mxu0 %v1851
    %1880 = vmatprep.subr.mxu0 0.0
    %1881 = vmatpush1.msra.mxu0 %v1852
    %1882 = vmatprep.subr.mxu0 0.0
    %1883 = vmatpush1.msra.mxu0 %v1853
    %1884 = vmatprep.subr.mxu0 0.0
    %1885 = vmatpush1.msra.mxu0 %v1854
    %1886 = vmatprep.subr.mxu0 0.0
    %1887 = vmatpush1.msra.mxu0 %v1855
    %1888 = vmatprep.subr.mxu0 0.0
    %1889 = vmatpush1.msra.mxu0 %v1856
    %1890 = vmatprep.subr.mxu0 0.0
    %1891 = vmatpush1.msra.mxu0 %v1857
    %1892 = vmatprep.subr.mxu0 0.0
    %1893 = vmatpush1.msra.mxu0 %v1858
    %1894 = vmatprep.subr.mxu0 0.0
    %1895 = vmatpush1.msra.mxu0 %v1859
    %1896 = vmatprep.subr.mxu0 0.0
    %1897 = vmatpush1.msra.mxu0 %v1860
    %1898 = vmatprep.subr.mxu0 0.0
    %1899 = vmatpush1.msra.mxu0 %v1861
    %1900 = vmatprep.subr.mxu0 0.0
    %1901 = vmatpush1.msra.mxu0 %v1862
    %1902 = vmatprep.subr.mxu0 0.0
    %1903 = vmatpush1.msra.mxu0 0.0
    %1904 = vmatprep.subr.mxu0 0.0
    %1905 = vmatpush1.msra.mxu0 0.0
    %1906 = vmatprep.subr.mxu0 0.0
    %1907 = vmatpush1.msra.mxu0 0.0
    %1908 = vmatprep.subr.mxu0 0.0
    %1909 = vmatpush1.msra.mxu0 0.0
    %1910 = vmatprep.subr.mxu0 0.0
    %1911 = vmatpush1.msra.mxu0 0.0
    %1912 = vmatprep.subr.mxu0 0.0
    %1913 = vmatpush1.msra.mxu0 0.0
    %1914 = vmatprep.subr.mxu0 0.0
    %1915 = vmatpush1.msra.mxu0 0.0
    %1916 = vmatprep.subr.mxu0 0.0
    %1917 = vmatpush1.msra.mxu0 0.0
    %1918 = vmatprep.subr.mxu0 0.0
    %1919 = vmatpush1.msra.mxu0 0.0
    %1920 = vmatprep.subr.mxu0 0.0
    %1921 = vmatpush1.msra.mxu0 0.0
    %1922 = vmatprep.subr.mxu0 0.0
    %1923 = vmatpush1.msra.mxu0 0.0
    %1924 = vmatprep.subr.mxu0 0.0
    %1925 = vmatpush1.msra.mxu0 0.0
    %1926 = vmatprep.subr.mxu0 0.0
    %1927 = vmatpush1.msra.mxu0 0.0
    %1928 = vmatprep.subr.mxu0 0.0
    %1929 = vmatpush1.msra.mxu0 0.0
    %1930 = vmatprep.subr.mxu0 0.0
    %1931 = vmatpush1.msra.mxu0 0.0
    %1932 = vmatprep.subr.mxu0 0.0
    %1933 = vmatpush1.msra.mxu0 0.0
    %1934 = vmatprep.mubr.f32.mxu0 0.0
    %1935 = vmatmul.mubr.f32.gmra.mrb[0].mxu0 %v1844
    %v1936 = vpop.f32.mrb[0].mxu0
    %v1937 = vadd.f32 %v1868, %v1936
    %v1938 = vpop.f32.mrb[0].mxu0
    %1939 = vdwg.mxu0
    %1940 = vst [vmem:[%s8] sm:$0xff] %v1937
    // Predicated region
    $region34: #{nn_lstm_forward.1} parent=1 // pred_check
      _
    $region35: #{nn_lstm_forward.1} parent=1 // pred_check_branch
      %1942 = sbr.rel (0) target = $region37
    $region36: #{nn_lstm_forward.1} parent=1 // pred_region
      _
    $region37: #{nn_lstm_forward.1} parent=1 // pred_fallthru
      _
    // Predicated region
    $region38: #{nn_lstm_forward.1} parent=1 // pred_check
      _
    $region39: #{nn_lstm_forward.1} parent=1 // pred_check_branch
      %1944 = sbr.rel (0) target = $region41
    $region40: #{nn_lstm_forward.1} parent=1 // pred_region
      %s1946 = ssub.s32 128, 128
      %1947 = vsyncadd [#allocation4], %s1946
      %s1949 = sshll.u32 [#allocation3], 4
      %s1950 = int_to_ptr.vmem [resolvable:$true] %s1949
      %1952 = dma.vmem_to_hbm [thread:$0]  %s1950, 128, %s9, [#allocation4]
    $region41: #{nn_lstm_forward.1} parent=1 // pred_fallthru
      _
    // Predicated region
    $region42: #{nn_lstm_forward.1} parent=1 // pred_check
      _
    $region43: #{nn_lstm_forward.1} parent=1 // pred_check_branch
      %1954 = sbr.rel (0) target = $region45
    $region44: #{nn_lstm_forward.1} parent=1 // pred_region
      %s1956 = ssub.s32 128, 128
      %1957 = vsyncadd [#allocation6], %s1956
      %s1959 = sshll.u32 [#allocation5], 4
      %s1960 = int_to_ptr.vmem [resolvable:$true] %s1959
      %1962 = dma.vmem_to_hbm [thread:$0]  %s1960, 128, %s10, [#allocation6]
    $region45: #{nn_lstm_forward.1} parent=1 // pred_fallthru
      _
    // Predicated region
    $region46: #{nn_lstm_forward.1} parent=1 // pred_check
      _
    $region47: #{nn_lstm_forward.1} parent=1 // pred_check_branch
      %1964 = sbr.rel (0) target = $region49
    $region48: #{nn_lstm_forward.1} parent=1 // pred_region
      _
    $region49: #{nn_lstm_forward.1} parent=1 // pred_fallthru
      _
    // Predicated region
    $region50: #{nn_lstm_forward.1} parent=1 // pred_check
      _
    $region51: #{nn_lstm_forward.1} parent=1 // pred_check_branch
      %1966 = sbr.rel (0) target = $region53
    $region52: #{nn_lstm_forward.1} parent=1 // pred_region
      %1967 = dma.done [#allocation4], 128
    $region53: #{nn_lstm_forward.1} parent=1 // pred_fallthru
      _
    // Predicated region
    $region54: #{nn_lstm_forward.1} parent=1 // pred_check
      _
    $region55: #{nn_lstm_forward.1} parent=1 // pred_check_branch
      %1969 = sbr.rel (0) target = $region57
    $region56: #{nn_lstm_forward.1} parent=1 // pred_region
      %1970 = dma.done [#allocation6], 128
    $region57: #{nn_lstm_forward.1} parent=1 // pred_fallthru
      _
    %1971 = vsyncpa [#allocation4], 1
    %1972 = vsyncpa [#allocation6], 1

</llo_original>
